<compile_context>
chip_gen: v6e
topology: v6e:2x2x1
jax: 0.10.0
libtpu: 0.0.40
codegen_flags: <defaults>
</compile_context>

<pallas_src>
import math
import functools

import jax
import jax.numpy as jnp
from jax.experimental import pallas as pl
from jax.experimental.pallas import tpu as pltpu


# ----------------------------- Pallas kernel -------------------------------

def _layernorm(x, gamma, beta, eps=1e-5):
    # Single pass: E[x], E[x^2].
    mu = jnp.mean(x, axis=-1, keepdims=True)
    ms = jnp.mean(x * x, axis=-1, keepdims=True)
    var = ms - mu * mu
    return (x - mu) * jax.lax.rsqrt(var + eps) * gamma + beta


def encoder_stack_kernel(nhead, B, S,
                         x_ref,                                   # (B, S, D) f32
                         wq_ref, wk_ref, wv_ref,                  # (1, D, D) bf16
                         wo_ref,                                  # (1, nhead, dh, D) bf16
                         w1_ref, w2_ref,                          # (1, D, F)/(1, F, D) bf16
                         bq_ref, bk_ref, bv_ref, bo_ref,          # (1, 1, D) f32
                         b1_ref, b2_ref,                          # (1, 1, F)/(1, 1, D) f32
                         g1_ref, be1_ref, g2_ref, be2_ref,        # (1, 1, D) f32
                         o_ref,                                   # (B, S, D) f32
                         x_sc):                                   # scratch (B*S, D) f32
    l = pl.program_id(0)
    D = x_ref.shape[-1]
    N = B * S
    dh = D // nhead
    scale = 1.0 / math.sqrt(dh)
    f32 = jnp.float32
    bf16 = jnp.bfloat16

    # Load the (embedded + PE'd) activations into resident VMEM scratch once.
    @pl.when(l == 0)
    def _():
        x_sc[...] = x_ref[...].reshape(N, D)

    x = x_sc[...]                                    # (N, D) f32
    xb = x.astype(bf16)

    # --- multi-head self-attention: flat (B*S, D) projections ---
    q = jnp.dot(xb, wq_ref[0], preferred_element_type=f32) + bq_ref[0]
    k = jnp.dot(xb, wk_ref[0], preferred_element_type=f32) + bk_ref[0]
    v = jnp.dot(xb, wv_ref[0], preferred_element_type=f32) + bv_ref[0]

    # Out-projection accumulated per head: attn = bo + sum_h (softmax(qh kh^T) vh) wo_h
    attn = jnp.zeros((N, D), f32) + bo_ref[0]
    for h in range(nhead):                           # static loop over heads
        sl = slice(h * dh, (h + 1) * dh)
        qh = q[:, sl].reshape(B, S, dh).astype(bf16)
        kh = k[:, sl].reshape(B, S, dh).astype(bf16)
        vh = v[:, sl].reshape(B, S, dh).astype(bf16)
        s = jnp.einsum('bqd,bkd->bqk', qh, kh,
                       preferred_element_type=f32) * scale       # (B, S, S)
        s = s - jnp.max(s, axis=-1, keepdims=True)
        p = jnp.exp(s)
        p = p * pl.reciprocal(jnp.sum(p, axis=-1, keepdims=True), approx=True)
        oh = jnp.einsum('bqk,bkd->bqd', p.astype(bf16), vh,
                        preferred_element_type=f32)              # (B, S, dh)
        attn = attn + jnp.dot(oh.reshape(N, dh).astype(bf16), wo_ref[0, h],
                              preferred_element_type=f32)

    # --- residual + LayerNorm 1 ---
    y = _layernorm(x + attn, g1_ref[0], be1_ref[0])

    # --- position-wise feed-forward (flat (B*S, D)) ---
    h1 = jnp.dot(y.astype(bf16), w1_ref[0], preferred_element_type=f32) + b1_ref[0]
    h1 = jnp.maximum(h1, 0.0)
    ff = jnp.dot(h1.astype(bf16), w2_ref[0], preferred_element_type=f32) + b2_ref[0]

    # --- residual + LayerNorm 2 ---
    z = _layernorm(y + ff, g2_ref[0], be2_ref[0])

    # Keep activation resident for the next layer; emit on the last layer only.
    x_sc[...] = z

    @pl.when(l == pl.num_programs(0) - 1)
    def _():
        o_ref[...] = z.reshape(B, S, D).astype(o_ref.dtype)


# ------------------------------ JAX wrappers --------------------------------

def sinusoidal_pe(max_len, d_model):
    pos = jnp.arange(max_len, dtype=jnp.float32)[:, None]
    div = jnp.exp(jnp.arange(0, d_model, 2, dtype=jnp.float32)
                  * (-math.log(10000.0) / d_model))
    pe = jnp.zeros((max_len, d_model), dtype=jnp.float32)
    pe = pe.at[:, 0::2].set(jnp.sin(pos * div))
    pe = pe.at[:, 1::2].set(jnp.cos(pos * div))
    return pe


def init_params(key, vocab_size, d_model, nhead, num_layers, dim_ff):
    keys = jax.random.split(key, 1 + num_layers)
    emb = jax.random.normal(keys[0], (vocab_size, d_model), jnp.float32)
    s_attn = 1.0 / math.sqrt(d_model)
    s_ff = 1.0 / math.sqrt(dim_ff)

    def one_layer(k):
        lk = jax.random.split(k, 6)
        return dict(
            wq=jax.random.uniform(lk[0], (d_model, d_model), jnp.float32, -s_attn, s_attn),
            wk=jax.random.uniform(lk[1], (d_model, d_model), jnp.float32, -s_attn, s_attn),
            wv=jax.random.uniform(lk[2], (d_model, d_model), jnp.float32, -s_attn, s_attn),
            wo=jax.random.uniform(lk[3], (d_model, d_model), jnp.float32, -s_attn, s_attn),
            w1=jax.random.uniform(lk[4], (d_model, dim_ff), jnp.float32, -s_attn, s_attn),
            w2=jax.random.uniform(lk[5], (dim_ff, d_model), jnp.float32, -s_ff, s_ff),
            bq=jnp.zeros((1, d_model), jnp.float32),
            bk=jnp.zeros((1, d_model), jnp.float32),
            bv=jnp.zeros((1, d_model), jnp.float32),
            bo=jnp.zeros((1, d_model), jnp.float32),
            b1=jnp.zeros((1, dim_ff), jnp.float32),
            b2=jnp.zeros((1, d_model), jnp.float32),
            g1=jnp.ones((1, d_model), jnp.float32),
            be1=jnp.zeros((1, d_model), jnp.float32),
            g2=jnp.ones((1, d_model), jnp.float32),
            be2=jnp.zeros((1, d_model), jnp.float32),
        )

    layers = [one_layer(keys[1 + i]) for i in range(num_layers)]
    # Stack per-layer params along a leading L axis (layer grid axis).
    stacked = {name: jnp.stack([lp[name] for lp in layers], axis=0)
               for name in layers[0]}
    return emb, stacked


def encoder_forward(src_ids, emb_table, pe_table, params, nhead):
    B, S = src_ids.shape
    D = emb_table.shape[1]
    L, _, F = params["w1"].shape
    dh = D // nhead
    bf16 = jnp.bfloat16

    # Embedding gather + positional encoding: fused elementwise JAX glue.
    x = (emb_table[src_ids] + pe_table[None, :S, :]).astype(jnp.float32)

    # Matmul weights stored/streamed as bf16 MXU operands; out-proj pre-split
    # into per-head (dh, D) blocks so the kernel never concatenates heads.
    wq = params["wq"].astype(bf16)
    wk = params["wk"].astype(bf16)
    wv = params["wv"].astype(bf16)
    wo = params["wo"].reshape(L, nhead, dh, D).astype(bf16)
    w1 = params["w1"].astype(bf16)
    w2 = params["w2"].astype(bf16)

    def lspec(*shape):
        n = len(shape)
        # Per-layer block streamed along the leading L axis.
        return pl.BlockSpec((1,) + shape, lambda l, _n=n: (l,) + (0,) * _n)

    kernel = functools.partial(encoder_stack_kernel, nhead, B, S)
    return pl.pallas_call(
        kernel,
        out_shape=jax.ShapeDtypeStruct((B, S, D), jnp.float32),
        grid_spec=pltpu.PrefetchScalarGridSpec(
            num_scalar_prefetch=0,
            grid=(L,),
            in_specs=[
                # Activation input: constant block index -> fetched to VMEM once.
                pl.BlockSpec((B, S, D), lambda l: (0, 0, 0)),
                lspec(D, D), lspec(D, D), lspec(D, D),            # wq, wk, wv
                lspec(nhead, dh, D),                              # wo (per-head)
                lspec(D, F), lspec(F, D),                         # w1, w2
                lspec(1, D), lspec(1, D), lspec(1, D), lspec(1, D),   # bq bk bv bo
                lspec(1, F), lspec(1, D),                         # b1, b2
                lspec(1, D), lspec(1, D), lspec(1, D), lspec(1, D),   # g1 be1 g2 be2
            ],
            # Constant output index -> stays resident, written back once at end.
            out_specs=pl.BlockSpec((B, S, D), lambda l: (0, 0, 0)),
            scratch_shapes=[pltpu.VMEM((B * S, D), jnp.float32)],
        ),
        compiler_params=pltpu.CompilerParams(
            dimension_semantics=("arbitrary",),          # layers are sequential
            vmem_limit_bytes=32 * 1024 * 1024,
        ),
    )(x, wq, wk, wv, wo, w1, w2,
      params["bq"], params["bk"], params["bv"], params["bo"],
      params["b1"], params["b2"],
      params["g1"], params["be1"], params["g2"], params["be2"])


# ---------------------------------- main ------------------------------------

if __name__ == "__main__":
    vocab_size = 50
    d_model = 32
    nhead = 4
    num_layers = 2
    dim_feedforward = 64
    max_seq_length = 16
    B, S = 2, 8

    key = jax.random.PRNGKey(0)
    k_src, k_param = jax.random.split(key)
    src = jax.random.randint(k_src, (B, S), 0, vocab_size, dtype=jnp.int32)

    emb_table, params = init_params(
        k_param, vocab_size, d_model, nhead, num_layers, dim_feedforward)
    pe_table = sinusoidal_pe(max_seq_length, d_model)

    out = encoder_forward(src, emb_table, pe_table, params, nhead)
    out = jax.block_until_ready(out)
    assert out.shape == (B, S, d_model)
    assert bool(jnp.all(jnp.isfinite(out)))
    print("KERNEL_OK")
</pallas_src>

<mosaic_0001>
module attributes {stable_mosaic.version = 11 : i64} {
  func.func @encoder_stack_kernel(%arg0: i32, %arg1: memref<2x8x32xf32, #tpu.memory_space<vmem>>, %arg2: memref<1x32x32xbf16, #tpu.memory_space<vmem>>, %arg3: memref<1x32x32xbf16, #tpu.memory_space<vmem>>, %arg4: memref<1x32x32xbf16, #tpu.memory_space<vmem>>, %arg5: memref<1x4x8x32xbf16, #tpu.memory_space<vmem>>, %arg6: memref<1x32x64xbf16, #tpu.memory_space<vmem>>, %arg7: memref<1x64x32xbf16, #tpu.memory_space<vmem>>, %arg8: memref<1x1x32xf32, #tpu.memory_space<vmem>>, %arg9: memref<1x1x32xf32, #tpu.memory_space<vmem>>, %arg10: memref<1x1x32xf32, #tpu.memory_space<vmem>>, %arg11: memref<1x1x32xf32, #tpu.memory_space<vmem>>, %arg12: memref<1x1x64xf32, #tpu.memory_space<vmem>>, %arg13: memref<1x1x32xf32, #tpu.memory_space<vmem>>, %arg14: memref<1x1x32xf32, #tpu.memory_space<vmem>>, %arg15: memref<1x1x32xf32, #tpu.memory_space<vmem>>, %arg16: memref<1x1x32xf32, #tpu.memory_space<vmem>>, %arg17: memref<1x1x32xf32, #tpu.memory_space<vmem>>, %arg18: memref<2x8x32xf32, #tpu.memory_space<vmem>>, %arg19: memref<16x32xf32, #tpu.memory_space<vmem>>) attributes {dimension_semantics = [#tpu.dimension_semantics<arbitrary>], iteration_bounds = array<i64: 2>, scalar_prefetch = 0 : i64, scratch_operands = 1 : i64, tpu.core_type = #tpu.core_type<tc>, window_params = [{pipeline_mode = #tpu.pipeline_mode<synchronous>, transform_indices = @transform_0, window_bounds = array<i64: 2, 8, 32>}, {transform_indices = @transform_1, window_bounds = array<i64: 1, 32, 32>}, {transform_indices = @transform_2, window_bounds = array<i64: 1, 32, 32>}, {transform_indices = @transform_3, window_bounds = array<i64: 1, 32, 32>}, {transform_indices = @transform_4, window_bounds = array<i64: 1, 4, 8, 32>}, {transform_indices = @transform_5, window_bounds = array<i64: 1, 32, 64>}, {transform_indices = @transform_6, window_bounds = array<i64: 1, 64, 32>}, {transform_indices = @transform_7, window_bounds = array<i64: 1, 1, 32>}, {transform_indices = @transform_8, window_bounds = array<i64: 1, 1, 32>}, {transform_indices = @transform_9, window_bounds = array<i64: 1, 1, 32>}, {transform_indices = @transform_10, window_bounds = array<i64: 1, 1, 32>}, {transform_indices = @transform_11, window_bounds = array<i64: 1, 1, 64>}, {transform_indices = @transform_12, window_bounds = array<i64: 1, 1, 32>}, {transform_indices = @transform_13, window_bounds = array<i64: 1, 1, 32>}, {transform_indices = @transform_14, window_bounds = array<i64: 1, 1, 32>}, {transform_indices = @transform_15, window_bounds = array<i64: 1, 1, 32>}, {transform_indices = @transform_16, window_bounds = array<i64: 1, 1, 32>}, {pipeline_mode = #tpu.pipeline_mode<synchronous>, transform_indices = @transform_17, window_bounds = array<i64: 2, 8, 32>}]} {
    %c0_i32 = arith.constant 0 : i32
    %0 = arith.cmpi eq, %arg0, %c0_i32 : i32
    %1 = arith.extui %0 : i1 to i32
    %c0_i32_0 = arith.constant 0 : i32
    %2 = arith.cmpi ne, %1, %c0_i32_0 : i32
    scf.if %2 {
      %c0_103 = arith.constant 0 : index
      %c0_104 = arith.constant 0 : index
      %c0_105 = arith.constant 0 : index
      %227 = vector.load %arg1[%c0_103, %c0_104, %c0_105] : memref<2x8x32xf32, #tpu.memory_space<vmem>>, vector<2x8x32xf32>
      %228 = vector.shape_cast %227 : vector<2x8x32xf32> to vector<16x32xf32>
      %c0_106 = arith.constant 0 : index
      %c0_107 = arith.constant 0 : index
      %229 = vector.load %arg19[%c0_106, %c0_107] : memref<16x32xf32, #tpu.memory_space<vmem>>, vector<16x32xf32>
      tpu.vector_store %arg19[%c0_106, %c0_107], %228 {strides = array<i32>} : memref<16x32xf32, #tpu.memory_space<vmem>>, vector<16x32xf32>,
    } else {
    }
    %c0 = arith.constant 0 : index
    %c0_1 = arith.constant 0 : index
    %3 = vector.load %arg19[%c0, %c0_1] : memref<16x32xf32, #tpu.memory_space<vmem>>, vector<16x32xf32>
    %4 = arith.truncf %3 : vector<16x32xf32> to vector<16x32xbf16>
    %c0_2 = arith.constant 0 : index
    %c0_3 = arith.constant 0 : index
    %c0_4 = arith.constant 0 : index
    %5 = vector.load %arg2[%c0_2, %c0_3, %c0_4] : memref<1x32x32xbf16, #tpu.memory_space<vmem>>, vector<1x32x32xbf16>
    %6 = vector.shape_cast %5 : vector<1x32x32xbf16> to vector<32x32xbf16>
    %cst = arith.constant dense<0.000000e+00> : vector<16x32xf32>
    %7 = tpu.matmul %4, %6, %cst {dimension_numbers = #tpu.dot_dimension_numbers<[1], [0], [0], [1], [0, 0, 1, 1], [], []>} : vector<16x32xbf16>, vector<32x32xbf16>, vector<16x32xf32> -> vector<16x32xf32>
    %c0_5 = arith.constant 0 : index
    %c0_6 = arith.constant 0 : index
    %c0_7 = arith.constant 0 : index
    %8 = vector.load %arg8[%c0_5, %c0_6, %c0_7] : memref<1x1x32xf32, #tpu.memory_space<vmem>>, vector<1x1x32xf32>
    %9 = vector.shape_cast %8 : vector<1x1x32xf32> to vector<1x32xf32>
    %10 = vector.broadcast %9 : vector<1x32xf32> to vector<16x32xf32>
    %11 = arith.addf %7, %10 : vector<16x32xf32>
    %c0_8 = arith.constant 0 : index
    %c0_9 = arith.constant 0 : index
    %c0_10 = arith.constant 0 : index
    %12 = vector.load %arg3[%c0_8, %c0_9, %c0_10] : memref<1x32x32xbf16, #tpu.memory_space<vmem>>, vector<1x32x32xbf16>
    %13 = vector.shape_cast %12 : vector<1x32x32xbf16> to vector<32x32xbf16>
    %cst_11 = arith.constant dense<0.000000e+00> : vector<16x32xf32>
    %14 = tpu.matmul %4, %13, %cst_11 {dimension_numbers = #tpu.dot_dimension_numbers<[1], [0], [0], [1], [0, 0, 1, 1], [], []>} : vector<16x32xbf16>, vector<32x32xbf16>, vector<16x32xf32> -> vector<16x32xf32>
    %c0_12 = arith.constant 0 : index
    %c0_13 = arith.constant 0 : index
    %c0_14 = arith.constant 0 : index
    %15 = vector.load %arg9[%c0_12, %c0_13, %c0_14] : memref<1x1x32xf32, #tpu.memory_space<vmem>>, vector<1x1x32xf32>
    %16 = vector.shape_cast %15 : vector<1x1x32xf32> to vector<1x32xf32>
    %17 = vector.broadcast %16 : vector<1x32xf32> to vector<16x32xf32>
    %18 = arith.addf %14, %17 : vector<16x32xf32>
    %c0_15 = arith.constant 0 : index
    %c0_16 = arith.constant 0 : index
    %c0_17 = arith.constant 0 : index
    %19 = vector.load %arg4[%c0_15, %c0_16, %c0_17] : memref<1x32x32xbf16, #tpu.memory_space<vmem>>, vector<1x32x32xbf16>
    %20 = vector.shape_cast %19 : vector<1x32x32xbf16> to vector<32x32xbf16>
    %cst_18 = arith.constant dense<0.000000e+00> : vector<16x32xf32>
    %21 = tpu.matmul %4, %20, %cst_18 {dimension_numbers = #tpu.dot_dimension_numbers<[1], [0], [0], [1], [0, 0, 1, 1], [], []>} : vector<16x32xbf16>, vector<32x32xbf16>, vector<16x32xf32> -> vector<16x32xf32>
    %c0_19 = arith.constant 0 : index
    %c0_20 = arith.constant 0 : index
    %c0_21 = arith.constant 0 : index
    %22 = vector.load %arg10[%c0_19, %c0_20, %c0_21] : memref<1x1x32xf32, #tpu.memory_space<vmem>>, vector<1x1x32xf32>
    %23 = vector.shape_cast %22 : vector<1x1x32xf32> to vector<1x32xf32>
    %24 = vector.broadcast %23 : vector<1x32xf32> to vector<16x32xf32>
    %25 = arith.addf %21, %24 : vector<16x32xf32>
    %cst_22 = arith.constant 0.000000e+00 : f32
    %26 = vector.broadcast %cst_22 : f32 to vector<16x32xf32>
    %c0_23 = arith.constant 0 : index
    %c0_24 = arith.constant 0 : index
    %c0_25 = arith.constant 0 : index
    %27 = vector.load %arg11[%c0_23, %c0_24, %c0_25] : memref<1x1x32xf32, #tpu.memory_space<vmem>>, vector<1x1x32xf32>
    %28 = vector.shape_cast %27 : vector<1x1x32xf32> to vector<1x32xf32>
    %29 = vector.broadcast %28 : vector<1x32xf32> to vector<16x32xf32>
    %30 = arith.addf %26, %29 : vector<16x32xf32>
    %31 = vector.extract_strided_slice %11 {offsets = [0, 0], sizes = [16, 8], strides = [1, 1]} : vector<16x32xf32> to vector<16x8xf32>
    %32 = vector.shape_cast %31 : vector<16x8xf32> to vector<2x8x8xf32>
    %33 = arith.truncf %32 : vector<2x8x8xf32> to vector<2x8x8xbf16>
    %34 = vector.extract_strided_slice %18 {offsets = [0, 0], sizes = [16, 8], strides = [1, 1]} : vector<16x32xf32> to vector<16x8xf32>
    %35 = vector.shape_cast %34 : vector<16x8xf32> to vector<2x8x8xf32>
    %36 = arith.truncf %35 : vector<2x8x8xf32> to vector<2x8x8xbf16>
    %37 = vector.extract_strided_slice %25 {offsets = [0, 0], sizes = [16, 8], strides = [1, 1]} : vector<16x32xf32> to vector<16x8xf32>
    %38 = vector.shape_cast %37 : vector<16x8xf32> to vector<2x8x8xf32>
    %39 = arith.truncf %38 : vector<2x8x8xf32> to vector<2x8x8xbf16>
    "tpu.trace_start"() <{level = 10 : i32, message = "bqd,bkd->bqk"}> : () -> ()
    %cst_26 = arith.constant dense<0.000000e+00> : vector<2x8x8xf32>
    %40 = tpu.matmul %33, %36, %cst_26 {dimension_numbers = #tpu.dot_dimension_numbers<[2], [2], [1], [1], [0, 0, 0, 1, 1, 1], [0], [0]>} : vector<2x8x8xbf16>, vector<2x8x8xbf16>, vector<2x8x8xf32> -> vector<2x8x8xf32>
    "tpu.trace_stop"() : () -> ()
    %cst_27 = arith.constant 0.353553385 : f32
    %41 = vector.broadcast %cst_27 : f32 to vector<2x8x8xf32>
    %42 = arith.mulf %40, %41 : vector<2x8x8xf32>
    %cst_28 = arith.constant dense<0xFF800000> : vector<2x8xf32>
    %43 = vector.multi_reduction <maximumf>, %42, %cst_28 [2] : vector<2x8x8xf32> to vector<2x8xf32>
    %44 = vector.shape_cast %43 : vector<2x8xf32> to vector<2x8x1xf32>
    %45 = vector.broadcast %44 : vector<2x8x1xf32> to vector<2x8x8xf32>
    %46 = arith.subf %42, %45 : vector<2x8x8xf32>
    %47 = math.exp %46 : vector<2x8x8xf32>
    %cst_29 = arith.constant dense<0.000000e+00> : vector<2x8xf32>
    %48 = vector.multi_reduction <add>, %47, %cst_29 [2] : vector<2x8x8xf32> to vector<2x8xf32>
    %49 = vector.shape_cast %48 : vector<2x8xf32> to vector<2x8x1xf32>
    %50 = tpu.reciprocal %49 {approx = true} : vector<2x8x1xf32> -> vector<2x8x1xf32>
    %51 = vector.broadcast %50 : vector<2x8x1xf32> to vector<2x8x8xf32>
    %52 = arith.mulf %47, %51 : vector<2x8x8xf32>
    %53 = arith.truncf %52 : vector<2x8x8xf32> to vector<2x8x8xbf16>
    "tpu.trace_start"() <{level = 10 : i32, message = "bqk,bkd->bqd"}> : () -> ()
    %cst_30 = arith.constant dense<0.000000e+00> : vector<2x8x8xf32>
    %54 = tpu.matmul %53, %39, %cst_30 {dimension_numbers = #tpu.dot_dimension_numbers<[2], [1], [1], [2], [0, 0, 0, 1, 1, 2], [0], [0]>} : vector<2x8x8xbf16>, vector<2x8x8xbf16>, vector<2x8x8xf32> -> vector<2x8x8xf32>
    "tpu.trace_stop"() : () -> ()
    %55 = vector.shape_cast %54 : vector<2x8x8xf32> to vector<16x8xf32>
    %56 = arith.truncf %55 : vector<16x8xf32> to vector<16x8xbf16>
    %c0_31 = arith.constant 0 : index
    %c0_32 = arith.constant 0 : index
    %c0_33 = arith.constant 0 : index
    %c0_34 = arith.constant 0 : index
    %57 = vector.load %arg5[%c0_31, %c0_32, %c0_33, %c0_34] : memref<1x4x8x32xbf16, #tpu.memory_space<vmem>>, vector<1x1x8x32xbf16>
    %58 = vector.shape_cast %57 : vector<1x1x8x32xbf16> to vector<8x32xbf16>
    %cst_35 = arith.constant dense<0.000000e+00> : vector<16x32xf32>
    %59 = tpu.matmul %56, %58, %cst_35 {dimension_numbers = #tpu.dot_dimension_numbers<[1], [0], [0], [1], [0, 0, 1, 1], [], []>} : vector<16x8xbf16>, vector<8x32xbf16>, vector<16x32xf32> -> vector<16x32xf32>
    %60 = arith.addf %30, %59 : vector<16x32xf32>
    %61 = vector.extract_strided_slice %11 {offsets = [0, 8], sizes = [16, 8], strides = [1, 1]} : vector<16x32xf32> to vector<16x8xf32>
    %62 = vector.shape_cast %61 : vector<16x8xf32> to vector<2x8x8xf32>
    %63 = arith.truncf %62 : vector<2x8x8xf32> to vector<2x8x8xbf16>
    %64 = vector.extract_strided_slice %18 {offsets = [0, 8], sizes = [16, 8], strides = [1, 1]} : vector<16x32xf32> to vector<16x8xf32>
    %65 = vector.shape_cast %64 : vector<16x8xf32> to vector<2x8x8xf32>
    %66 = arith.truncf %65 : vector<2x8x8xf32> to vector<2x8x8xbf16>
    %67 = vector.extract_strided_slice %25 {offsets = [0, 8], sizes = [16, 8], strides = [1, 1]} : vector<16x32xf32> to vector<16x8xf32>
    %68 = vector.shape_cast %67 : vector<16x8xf32> to vector<2x8x8xf32>
    %69 = arith.truncf %68 : vector<2x8x8xf32> to vector<2x8x8xbf16>
    "tpu.trace_start"() <{level = 10 : i32, message = "bqd,bkd->bqk"}> : () -> ()
    %cst_36 = arith.constant dense<0.000000e+00> : vector<2x8x8xf32>
    %70 = tpu.matmul %63, %66, %cst_36 {dimension_numbers = #tpu.dot_dimension_numbers<[2], [2], [1], [1], [0, 0, 0, 1, 1, 1], [0], [0]>} : vector<2x8x8xbf16>, vector<2x8x8xbf16>, vector<2x8x8xf32> -> vector<2x8x8xf32>
    "tpu.trace_stop"() : () -> ()
    %cst_37 = arith.constant 0.353553385 : f32
    %71 = vector.broadcast %cst_37 : f32 to vector<2x8x8xf32>
    %72 = arith.mulf %70, %71 : vector<2x8x8xf32>
    %cst_38 = arith.constant dense<0xFF800000> : vector<2x8xf32>
    %73 = vector.multi_reduction <maximumf>, %72, %cst_38 [2] : vector<2x8x8xf32> to vector<2x8xf32>
    %74 = vector.shape_cast %73 : vector<2x8xf32> to vector<2x8x1xf32>
    %75 = vector.broadcast %74 : vector<2x8x1xf32> to vector<2x8x8xf32>
    %76 = arith.subf %72, %75 : vector<2x8x8xf32>
    %77 = math.exp %76 : vector<2x8x8xf32>
    %cst_39 = arith.constant dense<0.000000e+00> : vector<2x8xf32>
    %78 = vector.multi_reduction <add>, %77, %cst_39 [2] : vector<2x8x8xf32> to vector<2x8xf32>
    %79 = vector.shape_cast %78 : vector<2x8xf32> to vector<2x8x1xf32>
    %80 = tpu.reciprocal %79 {approx = true} : vector<2x8x1xf32> -> vector<2x8x1xf32>
    %81 = vector.broadcast %80 : vector<2x8x1xf32> to vector<2x8x8xf32>
    %82 = arith.mulf %77, %81 : vector<2x8x8xf32>
    %83 = arith.truncf %82 : vector<2x8x8xf32> to vector<2x8x8xbf16>
    "tpu.trace_start"() <{level = 10 : i32, message = "bqk,bkd->bqd"}> : () -> ()
    %cst_40 = arith.constant dense<0.000000e+00> : vector<2x8x8xf32>
    %84 = tpu.matmul %83, %69, %cst_40 {dimension_numbers = #tpu.dot_dimension_numbers<[2], [1], [1], [2], [0, 0, 0, 1, 1, 2], [0], [0]>} : vector<2x8x8xbf16>, vector<2x8x8xbf16>, vector<2x8x8xf32> -> vector<2x8x8xf32>
    "tpu.trace_stop"() : () -> ()
    %85 = vector.shape_cast %84 : vector<2x8x8xf32> to vector<16x8xf32>
    %86 = arith.truncf %85 : vector<16x8xf32> to vector<16x8xbf16>
    %c0_41 = arith.constant 0 : index
    %c1 = arith.constant 1 : index
    %c0_42 = arith.constant 0 : index
    %c0_43 = arith.constant 0 : index
    %87 = vector.load %arg5[%c0_41, %c1, %c0_42, %c0_43] : memref<1x4x8x32xbf16, #tpu.memory_space<vmem>>, vector<1x1x8x32xbf16>
    %88 = vector.shape_cast %87 : vector<1x1x8x32xbf16> to vector<8x32xbf16>
    %cst_44 = arith.constant dense<0.000000e+00> : vector<16x32xf32>
    %89 = tpu.matmul %86, %88, %cst_44 {dimension_numbers = #tpu.dot_dimension_numbers<[1], [0], [0], [1], [0, 0, 1, 1], [], []>} : vector<16x8xbf16>, vector<8x32xbf16>, vector<16x32xf32> -> vector<16x32xf32>
    %90 = arith.addf %60, %89 : vector<16x32xf32>
    %91 = vector.extract_strided_slice %11 {offsets = [0, 16], sizes = [16, 8], strides = [1, 1]} : vector<16x32xf32> to vector<16x8xf32>
    %92 = vector.shape_cast %91 : vector<16x8xf32> to vector<2x8x8xf32>
    %93 = arith.truncf %92 : vector<2x8x8xf32> to vector<2x8x8xbf16>
    %94 = vector.extract_strided_slice %18 {offsets = [0, 16], sizes = [16, 8], strides = [1, 1]} : vector<16x32xf32> to vector<16x8xf32>
    %95 = vector.shape_cast %94 : vector<16x8xf32> to vector<2x8x8xf32>
    %96 = arith.truncf %95 : vector<2x8x8xf32> to vector<2x8x8xbf16>
    %97 = vector.extract_strided_slice %25 {offsets = [0, 16], sizes = [16, 8], strides = [1, 1]} : vector<16x32xf32> to vector<16x8xf32>
    %98 = vector.shape_cast %97 : vector<16x8xf32> to vector<2x8x8xf32>
    %99 = arith.truncf %98 : vector<2x8x8xf32> to vector<2x8x8xbf16>
    "tpu.trace_start"() <{level = 10 : i32, message = "bqd,bkd->bqk"}> : () -> ()
    %cst_45 = arith.constant dense<0.000000e+00> : vector<2x8x8xf32>
    %100 = tpu.matmul %93, %96, %cst_45 {dimension_numbers = #tpu.dot_dimension_numbers<[2], [2], [1], [1], [0, 0, 0, 1, 1, 1], [0], [0]>} : vector<2x8x8xbf16>, vector<2x8x8xbf16>, vector<2x8x8xf32> -> vector<2x8x8xf32>
    "tpu.trace_stop"() : () -> ()
    %cst_46 = arith.constant 0.353553385 : f32
    %101 = vector.broadcast %cst_46 : f32 to vector<2x8x8xf32>
    %102 = arith.mulf %100, %101 : vector<2x8x8xf32>
    %cst_47 = arith.constant dense<0xFF800000> : vector<2x8xf32>
    %103 = vector.multi_reduction <maximumf>, %102, %cst_47 [2] : vector<2x8x8xf32> to vector<2x8xf32>
    %104 = vector.shape_cast %103 : vector<2x8xf32> to vector<2x8x1xf32>
    %105 = vector.broadcast %104 : vector<2x8x1xf32> to vector<2x8x8xf32>
    %106 = arith.subf %102, %105 : vector<2x8x8xf32>
    %107 = math.exp %106 : vector<2x8x8xf32>
    %cst_48 = arith.constant dense<0.000000e+00> : vector<2x8xf32>
    %108 = vector.multi_reduction <add>, %107, %cst_48 [2] : vector<2x8x8xf32> to vector<2x8xf32>
    %109 = vector.shape_cast %108 : vector<2x8xf32> to vector<2x8x1xf32>
    %110 = tpu.reciprocal %109 {approx = true} : vector<2x8x1xf32> -> vector<2x8x1xf32>
    %111 = vector.broadcast %110 : vector<2x8x1xf32> to vector<2x8x8xf32>
    %112 = arith.mulf %107, %111 : vector<2x8x8xf32>
    %113 = arith.truncf %112 : vector<2x8x8xf32> to vector<2x8x8xbf16>
    "tpu.trace_start"() <{level = 10 : i32, message = "bqk,bkd->bqd"}> : () -> ()
    %cst_49 = arith.constant dense<0.000000e+00> : vector<2x8x8xf32>
    %114 = tpu.matmul %113, %99, %cst_49 {dimension_numbers = #tpu.dot_dimension_numbers<[2], [1], [1], [2], [0, 0, 0, 1, 1, 2], [0], [0]>} : vector<2x8x8xbf16>, vector<2x8x8xbf16>, vector<2x8x8xf32> -> vector<2x8x8xf32>
    "tpu.trace_stop"() : () -> ()
    %115 = vector.shape_cast %114 : vector<2x8x8xf32> to vector<16x8xf32>
    %116 = arith.truncf %115 : vector<16x8xf32> to vector<16x8xbf16>
    %c0_50 = arith.constant 0 : index
    %c2 = arith.constant 2 : index
    %c0_51 = arith.constant 0 : index
    %c0_52 = arith.constant 0 : index
    %117 = vector.load %arg5[%c0_50, %c2, %c0_51, %c0_52] : memref<1x4x8x32xbf16, #tpu.memory_space<vmem>>, vector<1x1x8x32xbf16>
    %118 = vector.shape_cast %117 : vector<1x1x8x32xbf16> to vector<8x32xbf16>
    %cst_53 = arith.constant dense<0.000000e+00> : vector<16x32xf32>
    %119 = tpu.matmul %116, %118, %cst_53 {dimension_numbers = #tpu.dot_dimension_numbers<[1], [0], [0], [1], [0, 0, 1, 1], [], []>} : vector<16x8xbf16>, vector<8x32xbf16>, vector<16x32xf32> -> vector<16x32xf32>
    %120 = arith.addf %90, %119 : vector<16x32xf32>
    %121 = vector.extract_strided_slice %11 {offsets = [0, 24], sizes = [16, 8], strides = [1, 1]} : vector<16x32xf32> to vector<16x8xf32>
    %122 = vector.shape_cast %121 : vector<16x8xf32> to vector<2x8x8xf32>
    %123 = arith.truncf %122 : vector<2x8x8xf32> to vector<2x8x8xbf16>
    %124 = vector.extract_strided_slice %18 {offsets = [0, 24], sizes = [16, 8], strides = [1, 1]} : vector<16x32xf32> to vector<16x8xf32>
    %125 = vector.shape_cast %124 : vector<16x8xf32> to vector<2x8x8xf32>
    %126 = arith.truncf %125 : vector<2x8x8xf32> to vector<2x8x8xbf16>
    %127 = vector.extract_strided_slice %25 {offsets = [0, 24], sizes = [16, 8], strides = [1, 1]} : vector<16x32xf32> to vector<16x8xf32>
    %128 = vector.shape_cast %127 : vector<16x8xf32> to vector<2x8x8xf32>
    %129 = arith.truncf %128 : vector<2x8x8xf32> to vector<2x8x8xbf16>
    "tpu.trace_start"() <{level = 10 : i32, message = "bqd,bkd->bqk"}> : () -> ()
    %cst_54 = arith.constant dense<0.000000e+00> : vector<2x8x8xf32>
    %130 = tpu.matmul %123, %126, %cst_54 {dimension_numbers = #tpu.dot_dimension_numbers<[2], [2], [1], [1], [0, 0, 0, 1, 1, 1], [0], [0]>} : vector<2x8x8xbf16>, vector<2x8x8xbf16>, vector<2x8x8xf32> -> vector<2x8x8xf32>
    "tpu.trace_stop"() : () -> ()
    %cst_55 = arith.constant 0.353553385 : f32
    %131 = vector.broadcast %cst_55 : f32 to vector<2x8x8xf32>
    %132 = arith.mulf %130, %131 : vector<2x8x8xf32>
    %cst_56 = arith.constant dense<0xFF800000> : vector<2x8xf32>
    %133 = vector.multi_reduction <maximumf>, %132, %cst_56 [2] : vector<2x8x8xf32> to vector<2x8xf32>
    %134 = vector.shape_cast %133 : vector<2x8xf32> to vector<2x8x1xf32>
    %135 = vector.broadcast %134 : vector<2x8x1xf32> to vector<2x8x8xf32>
    %136 = arith.subf %132, %135 : vector<2x8x8xf32>
    %137 = math.exp %136 : vector<2x8x8xf32>
    %cst_57 = arith.constant dense<0.000000e+00> : vector<2x8xf32>
    %138 = vector.multi_reduction <add>, %137, %cst_57 [2] : vector<2x8x8xf32> to vector<2x8xf32>
    %139 = vector.shape_cast %138 : vector<2x8xf32> to vector<2x8x1xf32>
    %140 = tpu.reciprocal %139 {approx = true} : vector<2x8x1xf32> -> vector<2x8x1xf32>
    %141 = vector.broadcast %140 : vector<2x8x1xf32> to vector<2x8x8xf32>
    %142 = arith.mulf %137, %141 : vector<2x8x8xf32>
    %143 = arith.truncf %142 : vector<2x8x8xf32> to vector<2x8x8xbf16>
    "tpu.trace_start"() <{level = 10 : i32, message = "bqk,bkd->bqd"}> : () -> ()
    %cst_58 = arith.constant dense<0.000000e+00> : vector<2x8x8xf32>
    %144 = tpu.matmul %143, %129, %cst_58 {dimension_numbers = #tpu.dot_dimension_numbers<[2], [1], [1], [2], [0, 0, 0, 1, 1, 2], [0], [0]>} : vector<2x8x8xbf16>, vector<2x8x8xbf16>, vector<2x8x8xf32> -> vector<2x8x8xf32>
    "tpu.trace_stop"() : () -> ()
    %145 = vector.shape_cast %144 : vector<2x8x8xf32> to vector<16x8xf32>
    %146 = arith.truncf %145 : vector<16x8xf32> to vector<16x8xbf16>
    %c0_59 = arith.constant 0 : index
    %c3 = arith.constant 3 : index
    %c0_60 = arith.constant 0 : index
    %c0_61 = arith.constant 0 : index
    %147 = vector.load %arg5[%c0_59, %c3, %c0_60, %c0_61] : memref<1x4x8x32xbf16, #tpu.memory_space<vmem>>, vector<1x1x8x32xbf16>
    %148 = vector.shape_cast %147 : vector<1x1x8x32xbf16> to vector<8x32xbf16>
    %cst_62 = arith.constant dense<0.000000e+00> : vector<16x32xf32>
    %149 = tpu.matmul %146, %148, %cst_62 {dimension_numbers = #tpu.dot_dimension_numbers<[1], [0], [0], [1], [0, 0, 1, 1], [], []>} : vector<16x8xbf16>, vector<8x32xbf16>, vector<16x32xf32> -> vector<16x32xf32>
    %150 = arith.addf %120, %149 : vector<16x32xf32>
    %151 = arith.addf %3, %150 : vector<16x32xf32>
    %c0_63 = arith.constant 0 : index
    %c0_64 = arith.constant 0 : index
    %c0_65 = arith.constant 0 : index
    %152 = vector.load %arg14[%c0_63, %c0_64, %c0_65] : memref<1x1x32xf32, #tpu.memory_space<vmem>>, vector<1x1x32xf32>
    %153 = vector.shape_cast %152 : vector<1x1x32xf32> to vector<1x32xf32>
    %c0_66 = arith.constant 0 : index
    %c0_67 = arith.constant 0 : index
    %c0_68 = arith.constant 0 : index
    %154 = vector.load %arg15[%c0_66, %c0_67, %c0_68] : memref<1x1x32xf32, #tpu.memory_space<vmem>>, vector<1x1x32xf32>
    %155 = vector.shape_cast %154 : vector<1x1x32xf32> to vector<1x32xf32>
    %cst_69 = arith.constant dense<0.000000e+00> : vector<16xf32>
    %156 = vector.multi_reduction <add>, %151, %cst_69 [1] : vector<16x32xf32> to vector<16xf32>
    %157 = vector.shape_cast %156 : vector<16xf32> to vector<16x1xf32>
    %cst_70 = arith.constant 3.200000e+01 : f32
    %158 = vector.broadcast %cst_70 : f32 to vector<16x1xf32>
    %159 = arith.divf %157, %158 : vector<16x1xf32>
    %160 = arith.mulf %151, %151 : vector<16x32xf32>
    %cst_71 = arith.constant dense<0.000000e+00> : vector<16xf32>
    %161 = vector.multi_reduction <add>, %160, %cst_71 [1] : vector<16x32xf32> to vector<16xf32>
    %162 = vector.shape_cast %161 : vector<16xf32> to vector<16x1xf32>
    %cst_72 = arith.constant 3.200000e+01 : f32
    %163 = vector.broadcast %cst_72 : f32 to vector<16x1xf32>
    %164 = arith.divf %162, %163 : vector<16x1xf32>
    %165 = arith.mulf %159, %159 : vector<16x1xf32>
    %166 = arith.subf %164, %165 : vector<16x1xf32>
    %167 = vector.broadcast %159 : vector<16x1xf32> to vector<16x32xf32>
    %168 = arith.subf %151, %167 : vector<16x32xf32>
    %cst_73 = arith.constant 9.99999974E-6 : f32
    %169 = vector.broadcast %cst_73 : f32 to vector<16x1xf32>
    %170 = arith.addf %166, %169 : vector<16x1xf32>
    %171 = math.rsqrt %170 : vector<16x1xf32>
    %172 = vector.broadcast %171 : vector<16x1xf32> to vector<16x32xf32>
    %173 = arith.mulf %168, %172 : vector<16x32xf32>
    %174 = vector.broadcast %153 : vector<1x32xf32> to vector<16x32xf32>
    %175 = arith.mulf %173, %174 : vector<16x32xf32>
    %176 = vector.broadcast %155 : vector<1x32xf32> to vector<16x32xf32>
    %177 = arith.addf %175, %176 : vector<16x32xf32>
    %178 = arith.truncf %177 : vector<16x32xf32> to vector<16x32xbf16>
    %c0_74 = arith.constant 0 : index
    %c0_75 = arith.constant 0 : index
    %c0_76 = arith.constant 0 : index
    %179 = vector.load %arg6[%c0_74, %c0_75, %c0_76] : memref<1x32x64xbf16, #tpu.memory_space<vmem>>, vector<1x32x64xbf16>
    %180 = vector.shape_cast %179 : vector<1x32x64xbf16> to vector<32x64xbf16>
    %cst_77 = arith.constant dense<0.000000e+00> : vector<16x64xf32>
    %181 = tpu.matmul %178, %180, %cst_77 {dimension_numbers = #tpu.dot_dimension_numbers<[1], [0], [0], [1], [0, 0, 1, 1], [], []>} : vector<16x32xbf16>, vector<32x64xbf16>, vector<16x64xf32> -> vector<16x64xf32>
    %c0_78 = arith.constant 0 : index
    %c0_79 = arith.constant 0 : index
    %c0_80 = arith.constant 0 : index
    %182 = vector.load %arg12[%c0_78, %c0_79, %c0_80] : memref<1x1x64xf32, #tpu.memory_space<vmem>>, vector<1x1x64xf32>
    %183 = vector.shape_cast %182 : vector<1x1x64xf32> to vector<1x64xf32>
    %184 = vector.broadcast %183 : vector<1x64xf32> to vector<16x64xf32>
    %185 = arith.addf %181, %184 : vector<16x64xf32>
    %cst_81 = arith.constant 0.000000e+00 : f32
    %186 = vector.broadcast %cst_81 : f32 to vector<16x64xf32>
    %187 = arith.maximumf %185, %186 : vector<16x64xf32>
    %188 = arith.truncf %187 : vector<16x64xf32> to vector<16x64xbf16>
    %c0_82 = arith.constant 0 : index
    %c0_83 = arith.constant 0 : index
    %c0_84 = arith.constant 0 : index
    %189 = vector.load %arg7[%c0_82, %c0_83, %c0_84] : memref<1x64x32xbf16, #tpu.memory_space<vmem>>, vector<1x64x32xbf16>
    %190 = vector.shape_cast %189 : vector<1x64x32xbf16> to vector<64x32xbf16>
    %cst_85 = arith.constant dense<0.000000e+00> : vector<16x32xf32>
    %191 = tpu.matmul %188, %190, %cst_85 {dimension_numbers = #tpu.dot_dimension_numbers<[1], [0], [0], [1], [0, 0, 1, 1], [], []>} : vector<16x64xbf16>, vector<64x32xbf16>, vector<16x32xf32> -> vector<16x32xf32>
    %c0_86 = arith.constant 0 : index
    %c0_87 = arith.constant 0 : index
    %c0_88 = arith.constant 0 : index
    %192 = vector.load %arg13[%c0_86, %c0_87, %c0_88] : memref<1x1x32xf32, #tpu.memory_space<vmem>>, vector<1x1x32xf32>
    %193 = vector.shape_cast %192 : vector<1x1x32xf32> to vector<1x32xf32>
    %194 = vector.broadcast %193 : vector<1x32xf32> to vector<16x32xf32>
    %195 = arith.addf %191, %194 : vector<16x32xf32>
    %196 = arith.addf %177, %195 : vector<16x32xf32>
    %c0_89 = arith.constant 0 : index
    %c0_90 = arith.constant 0 : index
    %c0_91 = arith.constant 0 : index
    %197 = vector.load %arg16[%c0_89, %c0_90, %c0_91] : memref<1x1x32xf32, #tpu.memory_space<vmem>>, vector<1x1x32xf32>
    %198 = vector.shape_cast %197 : vector<1x1x32xf32> to vector<1x32xf32>
    %c0_92 = arith.constant 0 : index
    %c0_93 = arith.constant 0 : index
    %c0_94 = arith.constant 0 : index
    %199 = vector.load %arg17[%c0_92, %c0_93, %c0_94] : memref<1x1x32xf32, #tpu.memory_space<vmem>>, vector<1x1x32xf32>
    %200 = vector.shape_cast %199 : vector<1x1x32xf32> to vector<1x32xf32>
    %cst_95 = arith.constant dense<0.000000e+00> : vector<16xf32>
    %201 = vector.multi_reduction <add>, %196, %cst_95 [1] : vector<16x32xf32> to vector<16xf32>
    %202 = vector.shape_cast %201 : vector<16xf32> to vector<16x1xf32>
    %cst_96 = arith.constant 3.200000e+01 : f32
    %203 = vector.broadcast %cst_96 : f32 to vector<16x1xf32>
    %204 = arith.divf %202, %203 : vector<16x1xf32>
    %205 = arith.mulf %196, %196 : vector<16x32xf32>
    %cst_97 = arith.constant dense<0.000000e+00> : vector<16xf32>
    %206 = vector.multi_reduction <add>, %205, %cst_97 [1] : vector<16x32xf32> to vector<16xf32>
    %207 = vector.shape_cast %206 : vector<16xf32> to vector<16x1xf32>
    %cst_98 = arith.constant 3.200000e+01 : f32
    %208 = vector.broadcast %cst_98 : f32 to vector<16x1xf32>
    %209 = arith.divf %207, %208 : vector<16x1xf32>
    %210 = arith.mulf %204, %204 : vector<16x1xf32>
    %211 = arith.subf %209, %210 : vector<16x1xf32>
    %212 = vector.broadcast %204 : vector<16x1xf32> to vector<16x32xf32>
    %213 = arith.subf %196, %212 : vector<16x32xf32>
    %cst_99 = arith.constant 9.99999974E-6 : f32
    %214 = vector.broadcast %cst_99 : f32 to vector<16x1xf32>
    %215 = arith.addf %211, %214 : vector<16x1xf32>
    %216 = math.rsqrt %215 : vector<16x1xf32>
    %217 = vector.broadcast %216 : vector<16x1xf32> to vector<16x32xf32>
    %218 = arith.mulf %213, %217 : vector<16x32xf32>
    %219 = vector.broadcast %198 : vector<1x32xf32> to vector<16x32xf32>
    %220 = arith.mulf %218, %219 : vector<16x32xf32>
    %221 = vector.broadcast %200 : vector<1x32xf32> to vector<16x32xf32>
    %222 = arith.addf %220, %221 : vector<16x32xf32>
    %c0_100 = arith.constant 0 : index
    %c0_101 = arith.constant 0 : index
    %223 = vector.load %arg19[%c0_100, %c0_101] : memref<16x32xf32, #tpu.memory_space<vmem>>, vector<16x32xf32>
    tpu.vector_store %arg19[%c0_100, %c0_101], %222 {strides = array<i32>} : memref<16x32xf32, #tpu.memory_space<vmem>>, vector<16x32xf32>,
    %c1_i32 = arith.constant 1 : i32
    %224 = arith.cmpi eq, %arg0, %c1_i32 : i32
    %225 = arith.extui %224 : i1 to i32
    %c0_i32_102 = arith.constant 0 : i32
    %226 = arith.cmpi ne, %225, %c0_i32_102 : i32
    scf.if %226 {
      %227 = vector.shape_cast %222 : vector<16x32xf32> to vector<2x8x32xf32>
      %c0_103 = arith.constant 0 : index
      %c0_104 = arith.constant 0 : index
      %c0_105 = arith.constant 0 : index
      %228 = vector.load %arg18[%c0_103, %c0_104, %c0_105] : memref<2x8x32xf32, #tpu.memory_space<vmem>>, vector<2x8x32xf32>
      tpu.vector_store %arg18[%c0_103, %c0_104, %c0_105], %227 {strides = array<i32>} : memref<2x8x32xf32, #tpu.memory_space<vmem>>, vector<2x8x32xf32>,
    } else {
    }
    return
  }
  func.func @transform_0(%arg0: i32) -> (i32, i32, i32) {
    %c0_i32 = arith.constant 0 : i32
    %c0_i32_0 = arith.constant 0 : i32
    %c0_i32_1 = arith.constant 0 : i32
    %c0_i32_2 = arith.constant 0 : i32
    return %c0_i32, %c0_i32_0, %c0_i32_1 : i32, i32, i32
  }
  func.func @transform_1(%arg0: i32) -> (i32, i32, i32) {
    %c0_i32 = arith.constant 0 : i32
    %c0_i32_0 = arith.constant 0 : i32
    %c0_i32_1 = arith.constant 0 : i32
    return %arg0, %c0_i32, %c0_i32_0 : i32, i32, i32
  }
  func.func @transform_2(%arg0: i32) -> (i32, i32, i32) {
    %c0_i32 = arith.constant 0 : i32
    %c0_i32_0 = arith.constant 0 : i32
    %c0_i32_1 = arith.constant 0 : i32
    return %arg0, %c0_i32, %c0_i32_0 : i32, i32, i32
  }
  func.func @transform_3(%arg0: i32) -> (i32, i32, i32) {
    %c0_i32 = arith.constant 0 : i32
    %c0_i32_0 = arith.constant 0 : i32
    %c0_i32_1 = arith.constant 0 : i32
    return %arg0, %c0_i32, %c0_i32_0 : i32, i32, i32
  }
  func.func @transform_4(%arg0: i32) -> (i32, i32, i32, i32) {
    %c0_i32 = arith.constant 0 : i32
    %c0_i32_0 = arith.constant 0 : i32
    %c0_i32_1 = arith.constant 0 : i32
    %c0_i32_2 = arith.constant 0 : i32
    return %arg0, %c0_i32, %c0_i32_0, %c0_i32_1 : i32, i32, i32, i32
  }
  func.func @transform_5(%arg0: i32) -> (i32, i32, i32) {
    %c0_i32 = arith.constant 0 : i32
    %c0_i32_0 = arith.constant 0 : i32
    %c0_i32_1 = arith.constant 0 : i32
    return %arg0, %c0_i32, %c0_i32_0 : i32, i32, i32
  }
  func.func @transform_6(%arg0: i32) -> (i32, i32, i32) {
    %c0_i32 = arith.constant 0 : i32
    %c0_i32_0 = arith.constant 0 : i32
    %c0_i32_1 = arith.constant 0 : i32
    return %arg0, %c0_i32, %c0_i32_0 : i32, i32, i32
  }
  func.func @transform_7(%arg0: i32) -> (i32, i32, i32) {
    %c0_i32 = arith.constant 0 : i32
    %c0_i32_0 = arith.constant 0 : i32
    %c0_i32_1 = arith.constant 0 : i32
    return %arg0, %c0_i32, %c0_i32_0 : i32, i32, i32
  }
  func.func @transform_8(%arg0: i32) -> (i32, i32, i32) {
    %c0_i32 = arith.constant 0 : i32
    %c0_i32_0 = arith.constant 0 : i32
    %c0_i32_1 = arith.constant 0 : i32
    return %arg0, %c0_i32, %c0_i32_0 : i32, i32, i32
  }
  func.func @transform_9(%arg0: i32) -> (i32, i32, i32) {
    %c0_i32 = arith.constant 0 : i32
    %c0_i32_0 = arith.constant 0 : i32
    %c0_i32_1 = arith.constant 0 : i32
    return %arg0, %c0_i32, %c0_i32_0 : i32, i32, i32
  }
  func.func @transform_10(%arg0: i32) -> (i32, i32, i32) {
    %c0_i32 = arith.constant 0 : i32
    %c0_i32_0 = arith.constant 0 : i32
    %c0_i32_1 = arith.constant 0 : i32
    return %arg0, %c0_i32, %c0_i32_0 : i32, i32, i32
  }
  func.func @transform_11(%arg0: i32) -> (i32, i32, i32) {
    %c0_i32 = arith.constant 0 : i32
    %c0_i32_0 = arith.constant 0 : i32
    %c0_i32_1 = arith.constant 0 : i32
    return %arg0, %c0_i32, %c0_i32_0 : i32, i32, i32
  }
  func.func @transform_12(%arg0: i32) -> (i32, i32, i32) {
    %c0_i32 = arith.constant 0 : i32
    %c0_i32_0 = arith.constant 0 : i32
    %c0_i32_1 = arith.constant 0 : i32
    return %arg0, %c0_i32, %c0_i32_0 : i32, i32, i32
  }
  func.func @transform_13(%arg0: i32) -> (i32, i32, i32) {
    %c0_i32 = arith.constant 0 : i32
    %c0_i32_0 = arith.constant 0 : i32
    %c0_i32_1 = arith.constant 0 : i32
    return %arg0, %c0_i32, %c0_i32_0 : i32, i32, i32
  }
  func.func @transform_14(%arg0: i32) -> (i32, i32, i32) {
    %c0_i32 = arith.constant 0 : i32
    %c0_i32_0 = arith.constant 0 : i32
    %c0_i32_1 = arith.constant 0 : i32
    return %arg0, %c0_i32, %c0_i32_0 : i32, i32, i32
  }
  func.func @transform_15(%arg0: i32) -> (i32, i32, i32) {
    %c0_i32 = arith.constant 0 : i32
    %c0_i32_0 = arith.constant 0 : i32
    %c0_i32_1 = arith.constant 0 : i32
    return %arg0, %c0_i32, %c0_i32_0 : i32, i32, i32
  }
  func.func @transform_16(%arg0: i32) -> (i32, i32, i32) {
    %c0_i32 = arith.constant 0 : i32
    %c0_i32_0 = arith.constant 0 : i32
    %c0_i32_1 = arith.constant 0 : i32
    return %arg0, %c0_i32, %c0_i32_0 : i32, i32, i32
  }
  func.func @transform_17(%arg0: i32) -> (i32, i32, i32) {
    %c0_i32 = arith.constant 0 : i32
    %c0_i32_0 = arith.constant 0 : i32
    %c0_i32_1 = arith.constant 0 : i32
    %c0_i32_2 = arith.constant 0 : i32
    return %c0_i32, %c0_i32_0, %c0_i32_1 : i32, i32, i32
  }
}

</mosaic_0001>

<llo_original>
// kernel: tpu_custom_call.1
$region0: #{tpu_custom_call.1}
  #allocation0 [shape = 'u32[]', space=smem, size = 0x4, offset = 0x4, fixed_abs, tag = 'smem constant byte address 0x4 - core index']
  #allocation1 [shape = 'u32[144,128]{1,0:T(1,128)}', space=vmem, size = 0x12000, scoped, tag = 'internal scratch']
  #allocation2 [shape = 'f32[16,32]{1,0:T(8,128)}', space=vmem, size = 0x2000, scoped, tag = 'scratch operand']
  %s0 = inlined_call_operand.hbm [shape: f32[2,8,32], index: 0, kind: input, shape index: {}]
  %s1 = inlined_call_operand.vmem [shape: bf16[2,32,32], index: 1, kind: input, shape index: {}]
  %s2 = inlined_call_operand.vmem [shape: bf16[2,32,32], index: 2, kind: input, shape index: {}]
  %s3 = inlined_call_operand.vmem [shape: bf16[2,32,32], index: 3, kind: input, shape index: {}]
  %s4 = inlined_call_operand.hbm [shape: bf16[2,4,8,32], index: 4, kind: input, shape index: {}]
  %s5 = inlined_call_operand.hbm [shape: bf16[2,32,64], index: 5, kind: input, shape index: {}]
  %s6 = inlined_call_operand.vmem [shape: bf16[2,64,32], index: 6, kind: input, shape index: {}]
  %s7 = inlined_call_operand.vmem [shape: f32[2,1,32], index: 7, kind: input, shape index: {}]
  %s8 = inlined_call_operand.vmem [shape: f32[2,1,32], index: 8, kind: input, shape index: {}]
  %s9 = inlined_call_operand.vmem [shape: f32[2,1,32], index: 9, kind: input, shape index: {}]
  %s10 = inlined_call_operand.vmem [shape: f32[2,1,32], index: 10, kind: input, shape index: {}]
  %s11 = inlined_call_operand.vmem [shape: f32[2,1,64], index: 11, kind: input, shape index: {}]
  %s12 = inlined_call_operand.vmem [shape: f32[2,1,32], index: 12, kind: input, shape index: {}]
  %s13 = inlined_call_operand.vmem [shape: f32[2,1,32], index: 13, kind: input, shape index: {}]
  %s14 = inlined_call_operand.vmem [shape: f32[2,1,32], index: 14, kind: input, shape index: {}]
  %s15 = inlined_call_operand.vmem [shape: f32[2,1,32], index: 15, kind: input, shape index: {}]
  %s16 = inlined_call_operand.vmem [shape: f32[2,1,32], index: 16, kind: input, shape index: {}]
  %s17 = inlined_call_operand.hbm [shape: f32[2,8,32], index: 17, kind: output, shape index: {}]
  %s18 = sld [smem:[#allocation0]]
  $region121: #{tpu_custom_call.1} parent=0
    _
  %s20 = ssub.s32 1, %s18
  %s21 = scalar_select 0, %s20, %s18
  $region1: #{tpu_custom_call.1} parent=0
    #allocation3 [shape = 'u8[8192]{0}', space=vmem, size = 0x2000, scoped, tag = 'input window, operand 0, single buffered']
    #allocation4 [shape = 's32[2]{0}', space=sflag, size = 0x8, scoped, tag = 'scoped memory for tpu_custom_call.1']
    #allocation5 [shape = 's32[2]{0}', space=sflag, size = 0x8, scoped, tag = 'scoped memory for tpu_custom_call.1']
    #allocation6 [shape = 'u8[16384]{0}', space=vmem, size = 0x4000, scoped, tag = 'input window, operand 4']
    #allocation7 [shape = 's32[2]{0}', space=sflag, size = 0x8, scoped, tag = 'scoped memory for tpu_custom_call.1']
    #allocation8 [shape = 'u8[16384]{0}', space=vmem, size = 0x4000, scoped, tag = 'input window, operand 5']
    #allocation9 [shape = 'u8[8192]{0}', space=vmem, size = 0x2000, scoped, tag = 'output window, operand 0, single buffered']
    %22 = vsyncpa [#allocation4], 0
    %23 = vsyncpa [#allocation7], 0
    %s24 = scalar_lea.sflag [#allocation7], 1
    %25 = vsyncpa %s24, 0
    %26 = vsyncpa [#allocation5], 0
    loop: start=0, step=1, limit=4
    $region2: #{tpu_custom_call.1} parent=1 // loop_pre_header
      _
    $region3: #{tpu_custom_call.1} parent=1 // loop_header
      %s28 = sphi 0, %s32
      %p29 = scmp.ge.s32.totalorder %s28, 4
      %s36 = sphi 0, %s36
      %s38 = sphi 0, %s36
      %s39 = sphi 0, %s38
      %s53 = sphi 0, %s39
      %s59 = sphi 0, %s61
      %s62 = sphi 0, %s59
      %s63 = sphi 0, %s62
      %s79 = sphi 0, %s63
      %s85 = sphi 0, %s87
      %s88 = sphi 0, %s85
      %s89 = sphi 0, %s88
      %s105 = sphi 0, %s89
      %s111 = sphi 0, %s113
      %s114 = sphi 0, %s111
      %s115 = sphi 0, %s114
      %s131 = sphi 0, %s115
      %s137 = sphi 0, %s139
      %s140 = sphi 0, %s137
      %s141 = sphi 0, %s140
      %s157 = sphi 0, %s141
      %s163 = sphi 0, %s165
      %s166 = sphi 0, %s163
      %s167 = sphi 0, %s166
      %s183 = sphi 0, %s167
      %s189 = sphi 0, %s191
      %s192 = sphi 0, %s189
      %s193 = sphi 0, %s192
      %s209 = sphi 0, %s193
      %s215 = sphi 0, %s217
      %s218 = sphi 0, %s215
      %s219 = sphi 0, %s218
      %s235 = sphi 0, %s219
      %s241 = sphi 0, %s243
      %s244 = sphi 0, %s241
      %s245 = sphi 0, %s244
      %s261 = sphi 0, %s245
      %s267 = sphi 0, %s269
      %s270 = sphi 0, %s267
      %s271 = sphi 0, %s270
      %s287 = sphi 0, %s271
      %s293 = sphi 0, %s295
      %s296 = sphi 0, %s293
      %s297 = sphi 0, %s296
      %s313 = sphi 0, %s297
      %s319 = sphi 0, %s321
      %s322 = sphi 0, %s319
      %s323 = sphi 0, %s322
      %s339 = sphi 0, %s323
      %s345 = sphi 0, %s347
      %s348 = sphi 0, %s345
      %s349 = sphi 0, %s348
      %s365 = sphi 0, %s349
      %s371 = sphi 0, %s373
      %s374 = sphi 0, %s371
      %s375 = sphi 0, %s374
      %s391 = sphi 0, %s375
      %s397 = sphi 0, %s399
      %s400 = sphi 0, %s397
      %s401 = sphi 0, %s400
      %s417 = sphi 0, %s401
      %s423 = sphi 0, %s425
      %s426 = sphi 0, %s423
      %s427 = sphi 0, %s426
      %s443 = sphi 0, %s427
      %s449 = sphi 0, %s451
      %s452 = sphi 0, %s449
      %s453 = sphi 0, %s452
      %s469 = sphi 0, %s453
      %s473 = sphi 0, %s473
      %s475 = sphi 0, %s473
      %s476 = sphi 0, %s475
      %s490 = sphi 0, %s476
    $region4: #{tpu_custom_call.1} parent=1 // loop_header_branch
      %31 = sbr.rel (%p29) target = $region8
    $region5: #{tpu_custom_call.1} parent=1 // loop_body
      %s33 = ssub.s32 %s28, 1
      %s34 = ssub.s32 %s28, 2
      %s35 = sadd.s32 %s28, 1
      %s37 = sadd.s32 %s36, 1
      %p40 = scmp.eq.s32.totalorder %s28, 1
      %p41 = scmp.ne.s32.totalorder %s36, %s38
      %p42 = scmp.eq.s32.totalorder %s28, 0
      %p43 = por %p41, %p42
      %p44 = scmp.ne.s32.totalorder %s36, %s38
      %p45 = scmp.eq.s32.totalorder %s33, 1
      %p46 = por %p44, %p45
      %p47 = scmp.ne.s32.totalorder %s38, %s39
      %p48 = scmp.eq.s32.totalorder %s33, 0
      %p49 = por %p47, %p48
      %p50 = scmp.ne.s32.totalorder %s38, %s39
      %p51 = scmp.eq.s32.totalorder %s34, 1
      %p52 = por %p50, %p51
      %p54 = scmp.ne.s32.totalorder %s39, %s53
      %p55 = scmp.eq.s32.totalorder %s34, 0
      %p56 = por %p54, %p55
      %s57 = ssub.s32 %s28, %s35
      %p58 = scmp.eq.s32.totalorder %s57, 0
      %s60 = sadd.s32 %s59, 1
      %s61 = scalar_select %p58, %s59, %s60
      %p64 = pneg %p58
      %p65 = scmp.eq.s32.totalorder %s28, 1
      %p66 = por %p64, %p65
      %p67 = scmp.ne.s32.totalorder %s59, %s62
      %p68 = scmp.eq.s32.totalorder %s28, 0
      %p69 = por %p67, %p68
      %p70 = scmp.ne.s32.totalorder %s59, %s62
      %p71 = scmp.eq.s32.totalorder %s33, 1
      %p72 = por %p70, %p71
      %p73 = scmp.ne.s32.totalorder %s62, %s63
      %p74 = scmp.eq.s32.totalorder %s33, 0
      %p75 = por %p73, %p74
      %p76 = scmp.ne.s32.totalorder %s62, %s63
      %p77 = scmp.eq.s32.totalorder %s34, 1
      %p78 = por %p76, %p77
      %p80 = scmp.ne.s32.totalorder %s63, %s79
      %p81 = scmp.eq.s32.totalorder %s34, 0
      %p82 = por %p80, %p81
      %s83 = ssub.s32 %s28, %s35
      %p84 = scmp.eq.s32.totalorder %s83, 0
      %s86 = sadd.s32 %s85, 1
      %s87 = scalar_select %p84, %s85, %s86
      %p90 = pneg %p84
      %p91 = scmp.eq.s32.totalorder %s28, 1
      %p92 = por %p90, %p91
      %p93 = scmp.ne.s32.totalorder %s85, %s88
      %p94 = scmp.eq.s32.totalorder %s28, 0
      %p95 = por %p93, %p94
      %p96 = scmp.ne.s32.totalorder %s85, %s88
      %p97 = scmp.eq.s32.totalorder %s33, 1
      %p98 = por %p96, %p97
      %p99 = scmp.ne.s32.totalorder %s88, %s89
      %p100 = scmp.eq.s32.totalorder %s33, 0
      %p101 = por %p99, %p100
      %p102 = scmp.ne.s32.totalorder %s88, %s89
      %p103 = scmp.eq.s32.totalorder %s34, 1
      %p104 = por %p102, %p103
      %p106 = scmp.ne.s32.totalorder %s89, %s105
      %p107 = scmp.eq.s32.totalorder %s34, 0
      %p108 = por %p106, %p107
      %s109 = ssub.s32 %s28, %s35
      %p110 = scmp.eq.s32.totalorder %s109, 0
      %s112 = sadd.s32 %s111, 1
      %s113 = scalar_select %p110, %s111, %s112
      %p116 = pneg %p110
      %p117 = scmp.eq.s32.totalorder %s28, 1
      %p118 = por %p116, %p117
      %p119 = scmp.ne.s32.totalorder %s111, %s114
      %p120 = scmp.eq.s32.totalorder %s28, 0
      %p121 = por %p119, %p120
      %p122 = scmp.ne.s32.totalorder %s111, %s114
      %p123 = scmp.eq.s32.totalorder %s33, 1
      %p124 = por %p122, %p123
      %p125 = scmp.ne.s32.totalorder %s114, %s115
      %p126 = scmp.eq.s32.totalorder %s33, 0
      %p127 = por %p125, %p126
      %p128 = scmp.ne.s32.totalorder %s114, %s115
      %p129 = scmp.eq.s32.totalorder %s34, 1
      %p130 = por %p128, %p129
      %p132 = scmp.ne.s32.totalorder %s115, %s131
      %p133 = scmp.eq.s32.totalorder %s34, 0
      %p134 = por %p132, %p133
      %s135 = ssub.s32 %s28, %s35
      %p136 = scmp.eq.s32.totalorder %s135, 0
      %s138 = sadd.s32 %s137, 1
      %s139 = scalar_select %p136, %s137, %s138
      %p142 = pneg %p136
      %p143 = scmp.eq.s32.totalorder %s28, 1
      %p144 = por %p142, %p143
      %p145 = scmp.ne.s32.totalorder %s137, %s140
      %p146 = scmp.eq.s32.totalorder %s28, 0
      %p147 = por %p145, %p146
      %p148 = scmp.ne.s32.totalorder %s137, %s140
      %p149 = scmp.eq.s32.totalorder %s33, 1
      %p150 = por %p148, %p149
      %p151 = scmp.ne.s32.totalorder %s140, %s141
      %p152 = scmp.eq.s32.totalorder %s33, 0
      %p153 = por %p151, %p152
      %p154 = scmp.ne.s32.totalorder %s140, %s141
      %p155 = scmp.eq.s32.totalorder %s34, 1
      %p156 = por %p154, %p155
      %p158 = scmp.ne.s32.totalorder %s141, %s157
      %p159 = scmp.eq.s32.totalorder %s34, 0
      %p160 = por %p158, %p159
      %s161 = ssub.s32 %s28, %s35
      %p162 = scmp.eq.s32.totalorder %s161, 0
      %s164 = sadd.s32 %s163, 1
      %s165 = scalar_select %p162, %s163, %s164
      %p168 = pneg %p162
      %p169 = scmp.eq.s32.totalorder %s28, 1
      %p170 = por %p168, %p169
      %p171 = scmp.ne.s32.totalorder %s163, %s166
      %p172 = scmp.eq.s32.totalorder %s28, 0
      %p173 = por %p171, %p172
      %p174 = scmp.ne.s32.totalorder %s163, %s166
      %p175 = scmp.eq.s32.totalorder %s33, 1
      %p176 = por %p174, %p175
      %p177 = scmp.ne.s32.totalorder %s166, %s167
      %p178 = scmp.eq.s32.totalorder %s33, 0
      %p179 = por %p177, %p178
      %p180 = scmp.ne.s32.totalorder %s166, %s167
      %p181 = scmp.eq.s32.totalorder %s34, 1
      %p182 = por %p180, %p181
      %p184 = scmp.ne.s32.totalorder %s167, %s183
      %p185 = scmp.eq.s32.totalorder %s34, 0
      %p186 = por %p184, %p185
      %s187 = ssub.s32 %s28, %s35
      %p188 = scmp.eq.s32.totalorder %s187, 0
      %s190 = sadd.s32 %s189, 1
      %s191 = scalar_select %p188, %s189, %s190
      %p194 = pneg %p188
      %p195 = scmp.eq.s32.totalorder %s28, 1
      %p196 = por %p194, %p195
      %p197 = scmp.ne.s32.totalorder %s189, %s192
      %p198 = scmp.eq.s32.totalorder %s28, 0
      %p199 = por %p197, %p198
      %p200 = scmp.ne.s32.totalorder %s189, %s192
      %p201 = scmp.eq.s32.totalorder %s33, 1
      %p202 = por %p200, %p201
      %p203 = scmp.ne.s32.totalorder %s192, %s193
      %p204 = scmp.eq.s32.totalorder %s33, 0
      %p205 = por %p203, %p204
      %p206 = scmp.ne.s32.totalorder %s192, %s193
      %p207 = scmp.eq.s32.totalorder %s34, 1
      %p208 = por %p206, %p207
      %p210 = scmp.ne.s32.totalorder %s193, %s209
      %p211 = scmp.eq.s32.totalorder %s34, 0
      %p212 = por %p210, %p211
      %s213 = ssub.s32 %s28, %s35
      %p214 = scmp.eq.s32.totalorder %s213, 0
      %s216 = sadd.s32 %s215, 1
      %s217 = scalar_select %p214, %s215, %s216
      %p220 = pneg %p214
      %p221 = scmp.eq.s32.totalorder %s28, 1
      %p222 = por %p220, %p221
      %p223 = scmp.ne.s32.totalorder %s215, %s218
      %p224 = scmp.eq.s32.totalorder %s28, 0
      %p225 = por %p223, %p224
      %p226 = scmp.ne.s32.totalorder %s215, %s218
      %p227 = scmp.eq.s32.totalorder %s33, 1
      %p228 = por %p226, %p227
      %p229 = scmp.ne.s32.totalorder %s218, %s219
      %p230 = scmp.eq.s32.totalorder %s33, 0
      %p231 = por %p229, %p230
      %p232 = scmp.ne.s32.totalorder %s218, %s219
      %p233 = scmp.eq.s32.totalorder %s34, 1
      %p234 = por %p232, %p233
      %p236 = scmp.ne.s32.totalorder %s219, %s235
      %p237 = scmp.eq.s32.totalorder %s34, 0
      %p238 = por %p236, %p237
      %s239 = ssub.s32 %s28, %s35
      %p240 = scmp.eq.s32.totalorder %s239, 0
      %s242 = sadd.s32 %s241, 1
      %s243 = scalar_select %p240, %s241, %s242
      %p246 = pneg %p240
      %p247 = scmp.eq.s32.totalorder %s28, 1
      %p248 = por %p246, %p247
      %p249 = scmp.ne.s32.totalorder %s241, %s244
      %p250 = scmp.eq.s32.totalorder %s28, 0
      %p251 = por %p249, %p250
      %p252 = scmp.ne.s32.totalorder %s241, %s244
      %p253 = scmp.eq.s32.totalorder %s33, 1
      %p254 = por %p252, %p253
      %p255 = scmp.ne.s32.totalorder %s244, %s245
      %p256 = scmp.eq.s32.totalorder %s33, 0
      %p257 = por %p255, %p256
      %p258 = scmp.ne.s32.totalorder %s244, %s245
      %p259 = scmp.eq.s32.totalorder %s34, 1
      %p260 = por %p258, %p259
      %p262 = scmp.ne.s32.totalorder %s245, %s261
      %p263 = scmp.eq.s32.totalorder %s34, 0
      %p264 = por %p262, %p263
      %s265 = ssub.s32 %s28, %s35
      %p266 = scmp.eq.s32.totalorder %s265, 0
      %s268 = sadd.s32 %s267, 1
      %s269 = scalar_select %p266, %s267, %s268
      %p272 = pneg %p266
      %p273 = scmp.eq.s32.totalorder %s28, 1
      %p274 = por %p272, %p273
      %p275 = scmp.ne.s32.totalorder %s267, %s270
      %p276 = scmp.eq.s32.totalorder %s28, 0
      %p277 = por %p275, %p276
      %p278 = scmp.ne.s32.totalorder %s267, %s270
      %p279 = scmp.eq.s32.totalorder %s33, 1
      %p280 = por %p278, %p279
      %p281 = scmp.ne.s32.totalorder %s270, %s271
      %p282 = scmp.eq.s32.totalorder %s33, 0
      %p283 = por %p281, %p282
      %p284 = scmp.ne.s32.totalorder %s270, %s271
      %p285 = scmp.eq.s32.totalorder %s34, 1
      %p286 = por %p284, %p285
      %p288 = scmp.ne.s32.totalorder %s271, %s287
      %p289 = scmp.eq.s32.totalorder %s34, 0
      %p290 = por %p288, %p289
      %s291 = ssub.s32 %s28, %s35
      %p292 = scmp.eq.s32.totalorder %s291, 0
      %s294 = sadd.s32 %s293, 1
      %s295 = scalar_select %p292, %s293, %s294
      %p298 = pneg %p292
      %p299 = scmp.eq.s32.totalorder %s28, 1
      %p300 = por %p298, %p299
      %p301 = scmp.ne.s32.totalorder %s293, %s296
      %p302 = scmp.eq.s32.totalorder %s28, 0
      %p303 = por %p301, %p302
      %p304 = scmp.ne.s32.totalorder %s293, %s296
      %p305 = scmp.eq.s32.totalorder %s33, 1
      %p306 = por %p304, %p305
      %p307 = scmp.ne.s32.totalorder %s296, %s297
      %p308 = scmp.eq.s32.totalorder %s33, 0
      %p309 = por %p307, %p308
      %p310 = scmp.ne.s32.totalorder %s296, %s297
      %p311 = scmp.eq.s32.totalorder %s34, 1
      %p312 = por %p310, %p311
      %p314 = scmp.ne.s32.totalorder %s297, %s313
      %p315 = scmp.eq.s32.totalorder %s34, 0
      %p316 = por %p314, %p315
      %s317 = ssub.s32 %s28, %s35
      %p318 = scmp.eq.s32.totalorder %s317, 0
      %s320 = sadd.s32 %s319, 1
      %s321 = scalar_select %p318, %s319, %s320
      %p324 = pneg %p318
      %p325 = scmp.eq.s32.totalorder %s28, 1
      %p326 = por %p324, %p325
      %p327 = scmp.ne.s32.totalorder %s319, %s322
      %p328 = scmp.eq.s32.totalorder %s28, 0
      %p329 = por %p327, %p328
      %p330 = scmp.ne.s32.totalorder %s319, %s322
      %p331 = scmp.eq.s32.totalorder %s33, 1
      %p332 = por %p330, %p331
      %p333 = scmp.ne.s32.totalorder %s322, %s323
      %p334 = scmp.eq.s32.totalorder %s33, 0
      %p335 = por %p333, %p334
      %p336 = scmp.ne.s32.totalorder %s322, %s323
      %p337 = scmp.eq.s32.totalorder %s34, 1
      %p338 = por %p336, %p337
      %p340 = scmp.ne.s32.totalorder %s323, %s339
      %p341 = scmp.eq.s32.totalorder %s34, 0
      %p342 = por %p340, %p341
      %s343 = ssub.s32 %s28, %s35
      %p344 = scmp.eq.s32.totalorder %s343, 0
      %s346 = sadd.s32 %s345, 1
      %s347 = scalar_select %p344, %s345, %s346
      %p350 = pneg %p344
      %p351 = scmp.eq.s32.totalorder %s28, 1
      %p352 = por %p350, %p351
      %p353 = scmp.ne.s32.totalorder %s345, %s348
      %p354 = scmp.eq.s32.totalorder %s28, 0
      %p355 = por %p353, %p354
      %p356 = scmp.ne.s32.totalorder %s345, %s348
      %p357 = scmp.eq.s32.totalorder %s33, 1
      %p358 = por %p356, %p357
      %p359 = scmp.ne.s32.totalorder %s348, %s349
      %p360 = scmp.eq.s32.totalorder %s33, 0
      %p361 = por %p359, %p360
      %p362 = scmp.ne.s32.totalorder %s348, %s349
      %p363 = scmp.eq.s32.totalorder %s34, 1
      %p364 = por %p362, %p363
      %p366 = scmp.ne.s32.totalorder %s349, %s365
      %p367 = scmp.eq.s32.totalorder %s34, 0
      %p368 = por %p366, %p367
      %s369 = ssub.s32 %s28, %s35
      %p370 = scmp.eq.s32.totalorder %s369, 0
      %s372 = sadd.s32 %s371, 1
      %s373 = scalar_select %p370, %s371, %s372
      %p376 = pneg %p370
      %p377 = scmp.eq.s32.totalorder %s28, 1
      %p378 = por %p376, %p377
      %p379 = scmp.ne.s32.totalorder %s371, %s374
      %p380 = scmp.eq.s32.totalorder %s28, 0
      %p381 = por %p379, %p380
      %p382 = scmp.ne.s32.totalorder %s371, %s374
      %p383 = scmp.eq.s32.totalorder %s33, 1
      %p384 = por %p382, %p383
      %p385 = scmp.ne.s32.totalorder %s374, %s375
      %p386 = scmp.eq.s32.totalorder %s33, 0
      %p387 = por %p385, %p386
      %p388 = scmp.ne.s32.totalorder %s374, %s375
      %p389 = scmp.eq.s32.totalorder %s34, 1
      %p390 = por %p388, %p389
      %p392 = scmp.ne.s32.totalorder %s375, %s391
      %p393 = scmp.eq.s32.totalorder %s34, 0
      %p394 = por %p392, %p393
      %s395 = ssub.s32 %s28, %s35
      %p396 = scmp.eq.s32.totalorder %s395, 0
      %s398 = sadd.s32 %s397, 1
      %s399 = scalar_select %p396, %s397, %s398
      %p402 = pneg %p396
      %p403 = scmp.eq.s32.totalorder %s28, 1
      %p404 = por %p402, %p403
      %p405 = scmp.ne.s32.totalorder %s397, %s400
      %p406 = scmp.eq.s32.totalorder %s28, 0
      %p407 = por %p405, %p406
      %p408 = scmp.ne.s32.totalorder %s397, %s400
      %p409 = scmp.eq.s32.totalorder %s33, 1
      %p410 = por %p408, %p409
      %p411 = scmp.ne.s32.totalorder %s400, %s401
      %p412 = scmp.eq.s32.totalorder %s33, 0
      %p413 = por %p411, %p412
      %p414 = scmp.ne.s32.totalorder %s400, %s401
      %p415 = scmp.eq.s32.totalorder %s34, 1
      %p416 = por %p414, %p415
      %p418 = scmp.ne.s32.totalorder %s401, %s417
      %p419 = scmp.eq.s32.totalorder %s34, 0
      %p420 = por %p418, %p419
      %s421 = ssub.s32 %s28, %s35
      %p422 = scmp.eq.s32.totalorder %s421, 0
      %s424 = sadd.s32 %s423, 1
      %s425 = scalar_select %p422, %s423, %s424
      %p428 = pneg %p422
      %p429 = scmp.eq.s32.totalorder %s28, 1
      %p430 = por %p428, %p429
      %p431 = scmp.ne.s32.totalorder %s423, %s426
      %p432 = scmp.eq.s32.totalorder %s28, 0
      %p433 = por %p431, %p432
      %p434 = scmp.ne.s32.totalorder %s423, %s426
      %p435 = scmp.eq.s32.totalorder %s33, 1
      %p436 = por %p434, %p435
      %p437 = scmp.ne.s32.totalorder %s426, %s427
      %p438 = scmp.eq.s32.totalorder %s33, 0
      %p439 = por %p437, %p438
      %p440 = scmp.ne.s32.totalorder %s426, %s427
      %p441 = scmp.eq.s32.totalorder %s34, 1
      %p442 = por %p440, %p441
      %p444 = scmp.ne.s32.totalorder %s427, %s443
      %p445 = scmp.eq.s32.totalorder %s34, 0
      %p446 = por %p444, %p445
      %s447 = ssub.s32 %s28, %s35
      %p448 = scmp.eq.s32.totalorder %s447, 0
      %s450 = sadd.s32 %s449, 1
      %s451 = scalar_select %p448, %s449, %s450
      %p454 = pneg %p448
      %p455 = scmp.eq.s32.totalorder %s28, 1
      %p456 = por %p454, %p455
      %p457 = scmp.ne.s32.totalorder %s449, %s452
      %p458 = scmp.eq.s32.totalorder %s28, 0
      %p459 = por %p457, %p458
      %p460 = scmp.ne.s32.totalorder %s449, %s452
      %p461 = scmp.eq.s32.totalorder %s33, 1
      %p462 = por %p460, %p461
      %p463 = scmp.ne.s32.totalorder %s452, %s453
      %p464 = scmp.eq.s32.totalorder %s33, 0
      %p465 = por %p463, %p464
      %p466 = scmp.ne.s32.totalorder %s452, %s453
      %p467 = scmp.eq.s32.totalorder %s34, 1
      %p468 = por %p466, %p467
      %p470 = scmp.ne.s32.totalorder %s453, %s469
      %p471 = scmp.eq.s32.totalorder %s34, 0
      %p472 = por %p470, %p471
      %s474 = sadd.s32 %s473, 1
      %p477 = scmp.eq.s32.totalorder %s28, 1
      %p478 = scmp.ne.s32.totalorder %s473, %s475
      %p479 = scmp.eq.s32.totalorder %s28, 0
      %p480 = por %p478, %p479
      %p481 = scmp.ne.s32.totalorder %s473, %s475
      %p482 = scmp.eq.s32.totalorder %s33, 1
      %p483 = por %p481, %p482
      %p484 = scmp.ne.s32.totalorder %s475, %s476
      %p485 = scmp.eq.s32.totalorder %s33, 0
      %p486 = por %p484, %p485
      %p487 = scmp.ne.s32.totalorder %s475, %s476
      %p488 = scmp.eq.s32.totalorder %s34, 1
      %p489 = por %p487, %p488
      %p491 = scmp.ne.s32.totalorder %s476, %s490
      %p492 = scmp.eq.s32.totalorder %s34, 0
      %p493 = por %p491, %p492
      %p494 = scmp.le.s32.totalorder 1, %s28
      %p495 = scmp.lt.s32.totalorder %s28, 3
      %p496 = pnand %p494, %p495
      %p497 = pneg %p496
      // Predicated region
      $region9: #{tpu_custom_call.1} parent=5 // pred_check
        _
      $region10: #{tpu_custom_call.1} parent=5 // pred_check_branch
        %499 = sbr.rel (%p496) target = $region12
      $region11: #{tpu_custom_call.1} parent=5 // pred_region
        %s500 = ssub.s32 %s28, 1
        // Predicated region
        $region13: #{tpu_custom_call.1} parent=11 // pred_check
          %p501 = pneg %p49
        $region14: #{tpu_custom_call.1} parent=11 // pred_check_branch
          %503 = sbr.rel (%p501) target = $region16
        $region15: #{tpu_custom_call.1} parent=11 // pred_region
          %s505 = ssub.s32 256, 256
          %506 = vsyncadd [#allocation4], %s505
          %s507 = sshll.u32 [#allocation3], 4
          %s508 = int_to_ptr.vmem [resolvable:$true] %s507
          %513 = dma.hbm_to_vmem [thread:$0]  %s0, 256, %s508, [#allocation4], 128, 128, 8
        $region16: #{tpu_custom_call.1} parent=11 // pred_fallthru
          _
      $region12: #{tpu_custom_call.1} parent=5 // pred_fallthru
        _
      %p514 = scmp.lt.s32.totalorder %s28, 2
      // Predicated region
      $region17: #{tpu_custom_call.1} parent=5 // pred_check
        %p515 = pneg %p514
      $region18: #{tpu_custom_call.1} parent=5 // pred_check_branch
        %517 = sbr.rel (%p515) target = $region20
      $region19: #{tpu_custom_call.1} parent=5 // pred_region
        // Predicated region
        $region21: #{tpu_custom_call.1} parent=19 // pred_check
          %p518 = pneg %p69
        $region22: #{tpu_custom_call.1} parent=19 // pred_check_branch
          %520 = sbr.rel (%p518) target = $region24
        $region23: #{tpu_custom_call.1} parent=19 // pred_region
          %p521 = scmp.lt.s32.totalorder %s28, 1
          %s522 = scalar_select %p521, %s28, 1
          %s523 = smul.addr %s522, 4
          %s524 = smul.addr %s523, 4
          %s525 = scalar_lea.vmem %s1, %s524
        $region24: #{tpu_custom_call.1} parent=19 // pred_fallthru
          _
        // Predicated region
        $region25: #{tpu_custom_call.1} parent=19 // pred_check
          %p526 = pneg %p95
        $region26: #{tpu_custom_call.1} parent=19 // pred_check_branch
          %528 = sbr.rel (%p526) target = $region28
        $region27: #{tpu_custom_call.1} parent=19 // pred_region
          %p529 = scmp.lt.s32.totalorder %s28, 1
          %s530 = scalar_select %p529, %s28, 1
          %s531 = smul.addr %s530, 4
          %s532 = smul.addr %s531, 4
          %s533 = scalar_lea.vmem %s2, %s532
        $region28: #{tpu_custom_call.1} parent=19 // pred_fallthru
          _
        // Predicated region
        $region29: #{tpu_custom_call.1} parent=19 // pred_check
          %p534 = pneg %p121
        $region30: #{tpu_custom_call.1} parent=19 // pred_check_branch
          %536 = sbr.rel (%p534) target = $region32
        $region31: #{tpu_custom_call.1} parent=19 // pred_region
          %p537 = scmp.lt.s32.totalorder %s28, 1
          %s538 = scalar_select %p537, %s28, 1
          %s539 = smul.addr %s538, 4
          %s540 = smul.addr %s539, 4
          %s541 = scalar_lea.vmem %s3, %s540
        $region32: #{tpu_custom_call.1} parent=19 // pred_fallthru
          _
        // Predicated region
        $region33: #{tpu_custom_call.1} parent=19 // pred_check
          %p542 = pneg %p147
        $region34: #{tpu_custom_call.1} parent=19 // pred_check_branch
          %544 = sbr.rel (%p542) target = $region36
        $region35: #{tpu_custom_call.1} parent=19 // pred_region
          %s545 = sand.u32 %s28, 1
          %s546 = scalar_lea.sflag [#allocation7], %s545
          %s547 = sand.u32 %s137, 1
          %s548 = smul.addr %s547, 16
          %s549 = scalar_lea.vmem [#allocation6], %s548
          %s551 = ssub.s32 256, 256
          %552 = vsyncadd %s546, %s551
          %s553 = smul.addr %s28, 4
          %s554 = smul.addr %s553, 64
          %s555 = scalar_lea.hbm %s4, %s554
          %s556 = sshll.u32 %s549, 4
          %s557 = int_to_ptr.vmem [resolvable:$true] %s556
          %562 = dma.hbm_to_vmem [thread:$0]  %s555, 256, %s557, %s546, 64, 64, 4
        $region36: #{tpu_custom_call.1} parent=19 // pred_fallthru
          _
        // Predicated region
        $region37: #{tpu_custom_call.1} parent=19 // pred_check
          %p563 = pneg %p173
        $region38: #{tpu_custom_call.1} parent=19 // pred_check_branch
          %565 = sbr.rel (%p563) target = $region40
        $region39: #{tpu_custom_call.1} parent=19 // pred_region
          %s566 = sand.u32 %s28, 1
          %s567 = scalar_lea.sflag [#allocation7], %s566
          %s568 = sand.u32 %s163, 1
          %s569 = smul.addr %s568, 16
          %s570 = scalar_lea.vmem [#allocation8], %s569
          %s572 = ssub.s32 256, 256
          %573 = vsyncadd %s567, %s572
          %s574 = smul.addr %s28, 4
          %s575 = smul.addr %s574, 64
          %s576 = scalar_lea.hbm %s5, %s575
          %s577 = sshll.u32 %s570, 4
          %s578 = int_to_ptr.vmem [resolvable:$true] %s577
          %583 = dma.hbm_to_vmem [thread:$0]  %s576, 256, %s578, %s567, 64, 64, 4
        $region40: #{tpu_custom_call.1} parent=19 // pred_fallthru
          _
        // Predicated region
        $region41: #{tpu_custom_call.1} parent=19 // pred_check
          %p584 = pneg %p199
        $region42: #{tpu_custom_call.1} parent=19 // pred_check_branch
          %586 = sbr.rel (%p584) target = $region44
        $region43: #{tpu_custom_call.1} parent=19 // pred_region
          %p587 = scmp.lt.s32.totalorder %s28, 1
          %s588 = scalar_select %p587, %s28, 1
          %s589 = smul.addr %s588, 8
          %s590 = smul.addr %s589, 4
          %s591 = scalar_lea.vmem %s6, %s590
        $region44: #{tpu_custom_call.1} parent=19 // pred_fallthru
          _
        // Predicated region
        $region45: #{tpu_custom_call.1} parent=19 // pred_check
          %p592 = pneg %p225
        $region46: #{tpu_custom_call.1} parent=19 // pred_check_branch
          %594 = sbr.rel (%p592) target = $region48
        $region47: #{tpu_custom_call.1} parent=19 // pred_region
          %p595 = scmp.lt.s32.totalorder %s28, 1
          %s596 = scalar_select %p595, %s28, 1
          %s597 = scalar_lea.vmem %s7, %s596
        $region48: #{tpu_custom_call.1} parent=19 // pred_fallthru
          _
        // Predicated region
        $region49: #{tpu_custom_call.1} parent=19 // pred_check
          %p598 = pneg %p251
        $region50: #{tpu_custom_call.1} parent=19 // pred_check_branch
          %600 = sbr.rel (%p598) target = $region52
        $region51: #{tpu_custom_call.1} parent=19 // pred_region
          %p601 = scmp.lt.s32.totalorder %s28, 1
          %s602 = scalar_select %p601, %s28, 1
          %s603 = scalar_lea.vmem %s8, %s602
        $region52: #{tpu_custom_call.1} parent=19 // pred_fallthru
          _
        // Predicated region
        $region53: #{tpu_custom_call.1} parent=19 // pred_check
          %p604 = pneg %p277
        $region54: #{tpu_custom_call.1} parent=19 // pred_check_branch
          %606 = sbr.rel (%p604) target = $region56
        $region55: #{tpu_custom_call.1} parent=19 // pred_region
          %p607 = scmp.lt.s32.totalorder %s28, 1
          %s608 = scalar_select %p607, %s28, 1
          %s609 = scalar_lea.vmem %s9, %s608
        $region56: #{tpu_custom_call.1} parent=19 // pred_fallthru
          _
        // Predicated region
        $region57: #{tpu_custom_call.1} parent=19 // pred_check
          %p610 = pneg %p303
        $region58: #{tpu_custom_call.1} parent=19 // pred_check_branch
          %612 = sbr.rel (%p610) target = $region60
        $region59: #{tpu_custom_call.1} parent=19 // pred_region
          %p613 = scmp.lt.s32.totalorder %s28, 1
          %s614 = scalar_select %p613, %s28, 1
          %s615 = scalar_lea.vmem %s10, %s614
        $region60: #{tpu_custom_call.1} parent=19 // pred_fallthru
          _
        // Predicated region
        $region61: #{tpu_custom_call.1} parent=19 // pred_check
          %p616 = pneg %p329
        $region62: #{tpu_custom_call.1} parent=19 // pred_check_branch
          %618 = sbr.rel (%p616) target = $region64
        $region63: #{tpu_custom_call.1} parent=19 // pred_region
          %p619 = scmp.lt.s32.totalorder %s28, 1
          %s620 = scalar_select %p619, %s28, 1
          %s621 = scalar_lea.vmem %s11, %s620
        $region64: #{tpu_custom_call.1} parent=19 // pred_fallthru
          _
        // Predicated region
        $region65: #{tpu_custom_call.1} parent=19 // pred_check
          %p622 = pneg %p355
        $region66: #{tpu_custom_call.1} parent=19 // pred_check_branch
          %624 = sbr.rel (%p622) target = $region68
        $region67: #{tpu_custom_call.1} parent=19 // pred_region
          %p625 = scmp.lt.s32.totalorder %s28, 1
          %s626 = scalar_select %p625, %s28, 1
          %s627 = scalar_lea.vmem %s12, %s626
        $region68: #{tpu_custom_call.1} parent=19 // pred_fallthru
          _
        // Predicated region
        $region69: #{tpu_custom_call.1} parent=19 // pred_check
          %p628 = pneg %p381
        $region70: #{tpu_custom_call.1} parent=19 // pred_check_branch
          %630 = sbr.rel (%p628) target = $region72
        $region71: #{tpu_custom_call.1} parent=19 // pred_region
          %p631 = scmp.lt.s32.totalorder %s28, 1
          %s632 = scalar_select %p631, %s28, 1
          %s633 = scalar_lea.vmem %s13, %s632
        $region72: #{tpu_custom_call.1} parent=19 // pred_fallthru
          _
        // Predicated region
        $region73: #{tpu_custom_call.1} parent=19 // pred_check
          %p634 = pneg %p407
        $region74: #{tpu_custom_call.1} parent=19 // pred_check_branch
          %636 = sbr.rel (%p634) target = $region76
        $region75: #{tpu_custom_call.1} parent=19 // pred_region
          %p637 = scmp.lt.s32.totalorder %s28, 1
          %s638 = scalar_select %p637, %s28, 1
          %s639 = scalar_lea.vmem %s14, %s638
        $region76: #{tpu_custom_call.1} parent=19 // pred_fallthru
          _
        // Predicated region
        $region77: #{tpu_custom_call.1} parent=19 // pred_check
          %p640 = pneg %p433
        $region78: #{tpu_custom_call.1} parent=19 // pred_check_branch
          %642 = sbr.rel (%p640) target = $region80
        $region79: #{tpu_custom_call.1} parent=19 // pred_region
          %p643 = scmp.lt.s32.totalorder %s28, 1
          %s644 = scalar_select %p643, %s28, 1
          %s645 = scalar_lea.vmem %s15, %s644
        $region80: #{tpu_custom_call.1} parent=19 // pred_fallthru
          _
        // Predicated region
        $region81: #{tpu_custom_call.1} parent=19 // pred_check
          %p646 = pneg %p459
        $region82: #{tpu_custom_call.1} parent=19 // pred_check_branch
          %648 = sbr.rel (%p646) target = $region84
        $region83: #{tpu_custom_call.1} parent=19 // pred_region
          %p649 = scmp.lt.s32.totalorder %s28, 1
          %s650 = scalar_select %p649, %s28, 1
          %s651 = scalar_lea.vmem %s16, %s650
        $region84: #{tpu_custom_call.1} parent=19 // pred_fallthru
          _
      $region20: #{tpu_custom_call.1} parent=5 // pred_fallthru
        _
      %p652 = scmp.le.s32.totalorder 1, %s28
      %p653 = scmp.lt.s32.totalorder %s28, 3
      %p654 = pnand %p652, %p653
      %p655 = pneg %p654
      // Predicated region
      $region85: #{tpu_custom_call.1} parent=5 // pred_check
        _
      $region86: #{tpu_custom_call.1} parent=5 // pred_check_branch
        %657 = sbr.rel (%p654) target = $region88
      $region87: #{tpu_custom_call.1} parent=5 // pred_region
        %s658 = ssub.s32 %s28, 1
        // Predicated region
        $region89: #{tpu_custom_call.1} parent=87 // pred_check
          %p659 = pneg %p49
        $region90: #{tpu_custom_call.1} parent=87 // pred_check_branch
          %661 = sbr.rel (%p659) target = $region92
        $region91: #{tpu_custom_call.1} parent=87 // pred_region
          %662 = dma.done [#allocation4], 256
        $region92: #{tpu_custom_call.1} parent=87 // pred_fallthru
          _
        %s663 = sand.u32 %s33, 1
        %s664 = scalar_lea.sflag [#allocation7], %s663
        %s665 = sand.u32 %s140, 1
        %s666 = smul.addr %s665, 16
        %s667 = scalar_lea.vmem [#allocation6], %s666
        // Predicated region
        $region93: #{tpu_custom_call.1} parent=87 // pred_check
          %p668 = pneg %p153
        $region94: #{tpu_custom_call.1} parent=87 // pred_check_branch
          %670 = sbr.rel (%p668) target = $region96
        $region95: #{tpu_custom_call.1} parent=87 // pred_region
          %671 = dma.done %s664, 256
        $region96: #{tpu_custom_call.1} parent=87 // pred_fallthru
          _
        %s672 = sand.u32 %s33, 1
        %s673 = scalar_lea.sflag [#allocation7], %s672
        %s674 = sand.u32 %s166, 1
        %s675 = smul.addr %s674, 16
        %s676 = scalar_lea.vmem [#allocation8], %s675
        // Predicated region
        $region97: #{tpu_custom_call.1} parent=87 // pred_check
          %p677 = pneg %p179
        $region98: #{tpu_custom_call.1} parent=87 // pred_check_branch
          %679 = sbr.rel (%p677) target = $region100
        $region99: #{tpu_custom_call.1} parent=87 // pred_region
          %680 = dma.done %s673, 256
        $region100: #{tpu_custom_call.1} parent=87 // pred_fallthru
          _
        %p681 = pneg %p49
        %p682 = pneg %p46
        %p683 = scmp.lt.s32.totalorder %s33, 1
        %s684 = scalar_select %p683, %s33, 1
        %s685 = smul.addr %s684, 4
        %s686 = smul.addr %s685, 4
        %s687 = scalar_lea.vmem %s1, %s686
        %p688 = pneg %p75
        %p689 = pneg %p72
        %p690 = scmp.lt.s32.totalorder %s33, 1
        %s691 = scalar_select %p690, %s33, 1
        %s692 = smul.addr %s691, 4
        %s693 = smul.addr %s692, 4
        %s694 = scalar_lea.vmem %s2, %s693
        %p695 = pneg %p101
        %p696 = pneg %p98
        %p697 = scmp.lt.s32.totalorder %s33, 1
        %s698 = scalar_select %p697, %s33, 1
        %s699 = smul.addr %s698, 4
        %s700 = smul.addr %s699, 4
        %s701 = scalar_lea.vmem %s3, %s700
        %p702 = pneg %p127
        %p703 = pneg %p124
        %s704 = sand.u32 %s33, 1
        %s705 = scalar_lea.sflag [#allocation7], %s704
        %s706 = sand.u32 %s140, 1
        %s707 = smul.addr %s706, 16
        %s708 = scalar_lea.vmem [#allocation6], %s707
        %p709 = pneg %p153
        %p710 = pneg %p150
        %s711 = sand.u32 %s33, 1
        %s712 = scalar_lea.sflag [#allocation7], %s711
        %s713 = sand.u32 %s166, 1
        %s714 = smul.addr %s713, 16
        %s715 = scalar_lea.vmem [#allocation8], %s714
        %p716 = pneg %p179
        %p717 = pneg %p176
        %p718 = scmp.lt.s32.totalorder %s33, 1
        %s719 = scalar_select %p718, %s33, 1
        %s720 = smul.addr %s719, 8
        %s721 = smul.addr %s720, 4
        %s722 = scalar_lea.vmem %s6, %s721
        %p723 = pneg %p205
        %p724 = pneg %p202
        %p725 = scmp.lt.s32.totalorder %s33, 1
        %s726 = scalar_select %p725, %s33, 1
        %s727 = scalar_lea.vmem %s7, %s726
        %p728 = pneg %p231
        %p729 = pneg %p228
        %p730 = scmp.lt.s32.totalorder %s33, 1
        %s731 = scalar_select %p730, %s33, 1
        %s732 = scalar_lea.vmem %s8, %s731
        %p733 = pneg %p257
        %p734 = pneg %p254
        %p735 = scmp.lt.s32.totalorder %s33, 1
        %s736 = scalar_select %p735, %s33, 1
        %s737 = scalar_lea.vmem %s9, %s736
        %p738 = pneg %p283
        %p739 = pneg %p280
        %p740 = scmp.lt.s32.totalorder %s33, 1
        %s741 = scalar_select %p740, %s33, 1
        %s742 = scalar_lea.vmem %s10, %s741
        %p743 = pneg %p309
        %p744 = pneg %p306
        %p745 = scmp.lt.s32.totalorder %s33, 1
        %s746 = scalar_select %p745, %s33, 1
        %s747 = scalar_lea.vmem %s11, %s746
        %p748 = pneg %p335
        %p749 = pneg %p332
        %p750 = scmp.lt.s32.totalorder %s33, 1
        %s751 = scalar_select %p750, %s33, 1
        %s752 = scalar_lea.vmem %s12, %s751
        %p753 = pneg %p361
        %p754 = pneg %p358
        %p755 = scmp.lt.s32.totalorder %s33, 1
        %s756 = scalar_select %p755, %s33, 1
        %s757 = scalar_lea.vmem %s13, %s756
        %p758 = pneg %p387
        %p759 = pneg %p384
        %p760 = scmp.lt.s32.totalorder %s33, 1
        %s761 = scalar_select %p760, %s33, 1
        %s762 = scalar_lea.vmem %s14, %s761
        %p763 = pneg %p413
        %p764 = pneg %p410
        %p765 = scmp.lt.s32.totalorder %s33, 1
        %s766 = scalar_select %p765, %s33, 1
        %s767 = scalar_lea.vmem %s15, %s766
        %p768 = pneg %p439
        %p769 = pneg %p436
        %p770 = scmp.lt.s32.totalorder %s33, 1
        %s771 = scalar_select %p770, %s33, 1
        %s772 = scalar_lea.vmem %s16, %s771
        %p773 = pneg %p465
        %p774 = pneg %p462
        %p775 = pneg %p486
        %p776 = pneg %p483
        %p777 = scmp.lt.s32.totalorder %s33, 1
        %s778 = scalar_select %p777, %s33, 1
        %s779 = smul.addr %s778, 4
        %s780 = smul.addr %s779, 4
        %s781 = scalar_lea.vmem %s1, %s780
        %p782 = scmp.lt.s32.totalorder %s33, 1
        %s783 = scalar_select %p782, %s33, 1
        %s784 = smul.addr %s783, 4
        %s785 = smul.addr %s784, 4
        %s786 = scalar_lea.vmem %s2, %s785
        %p787 = scmp.lt.s32.totalorder %s33, 1
        %s788 = scalar_select %p787, %s33, 1
        %s789 = smul.addr %s788, 4
        %s790 = smul.addr %s789, 4
        %s791 = scalar_lea.vmem %s3, %s790
        %p792 = scmp.lt.s32.totalorder %s33, 1
        %s793 = scalar_select %p792, %s33, 1
        %s794 = smul.addr %s793, 8
        %s795 = smul.addr %s794, 4
        %s796 = scalar_lea.vmem %s6, %s795
        %p797 = scmp.lt.s32.totalorder %s33, 1
        %s798 = scalar_select %p797, %s33, 1
        %s799 = scalar_lea.vmem %s7, %s798
        %p800 = scmp.lt.s32.totalorder %s33, 1
        %s801 = scalar_select %p800, %s33, 1
        %s802 = scalar_lea.vmem %s8, %s801
        %p803 = scmp.lt.s32.totalorder %s33, 1
        %s804 = scalar_select %p803, %s33, 1
        %s805 = scalar_lea.vmem %s9, %s804
        %p806 = scmp.lt.s32.totalorder %s33, 1
        %s807 = scalar_select %p806, %s33, 1
        %s808 = scalar_lea.vmem %s10, %s807
        %p809 = scmp.lt.s32.totalorder %s33, 1
        %s810 = scalar_select %p809, %s33, 1
        %s811 = scalar_lea.vmem %s11, %s810
        %p812 = scmp.lt.s32.totalorder %s33, 1
        %s813 = scalar_select %p812, %s33, 1
        %s814 = scalar_lea.vmem %s12, %s813
        %p815 = scmp.lt.s32.totalorder %s33, 1
        %s816 = scalar_select %p815, %s33, 1
        %s817 = scalar_lea.vmem %s13, %s816
        %p818 = scmp.lt.s32.totalorder %s33, 1
        %s819 = scalar_select %p818, %s33, 1
        %s820 = scalar_lea.vmem %s14, %s819
        %p821 = scmp.lt.s32.totalorder %s33, 1
        %s822 = scalar_select %p821, %s33, 1
        %s823 = scalar_lea.vmem %s15, %s822
        %p824 = scmp.lt.s32.totalorder %s33, 1
        %s825 = scalar_select %p824, %s33, 1
        %s826 = scalar_lea.vmem %s16, %s825
        %p828 = scmp.eq.s32.totalorder %s33, 0
        // Predicated region
        $region101: #{tpu_custom_call.1} parent=87 // pred_check
          %p829 = pneg %p828
        $region102: #{tpu_custom_call.1} parent=87 // pred_check_branch
          %831 = sbr.rel (%p829) target = $region104
        $region103: #{tpu_custom_call.1} parent=87 // pred_region
          %v832 = vld [vmem:[#allocation3] sm:$0xff]
          %v833 = vld [vmem:[#allocation3 + $0x8] sm:$0xff]
          %vm834 = vcmask 261120
          %835 = vst.msk [vmem:[#allocation2] sm:$0xff] %vm834, %v832
          %836 = vst.msk [vmem:[#allocation2 + $0x8] sm:$0xff] %vm834, %v833
        $region104: #{tpu_custom_call.1} parent=87 // pred_fallthru
          _
        %v837 = vld [vmem:[#allocation2] sm:$0xff]
        %v838 = vld [vmem:[#allocation2 + $0x8] sm:$0xff]
        %v839 = vpack.c.bf16 %v838, %v837
        %v840 = vld [vmem:[%s781] sm:$0xf]
        %v841 = vld [vmem:[%s781 + $0x4] sm:$0xf]
        %v842 = vld [vmem:[%s781 + $0x8] sm:$0xf]
        %v843 = vld [vmem:[%s781 + $0xc] sm:$0xf]
        %v844 = vld [vmem:[%s799] sm:$0x1]
        %v846 = vlaneseq
        %v847 = vshrl.u32 %v846, 7
        %v848 = vsub.s32 0, %v847
        %v849 = vrot.slane %v844, %v848
        %v855 = vunpack.c.l.b16 %v840
        %v856 = vunpack.c.l.b16 %v841
        %v857 = vunpack.c.l.b16 %v842
        %v858 = vunpack.c.l.b16 %v843
        %v859 = vpack.c.b16 %v856, %v855
        %v860 = vpack.c.b16 %v858, %v857
        %vm863 = vcmask 261120
        %v865 = vsel %vm863, %v839, 0
        %867 = vmatprep.subr.bf16.mxu0 0
        %868 = vmatpush1.bf16.msra.mxu0 0
        %869 = vmatprep.subr.bf16.mxu0 0
        %870 = vmatpush1.bf16.msra.mxu0 0
        %871 = vmatprep.subr.bf16.mxu0 0
        %872 = vmatpush1.bf16.msra.mxu0 0
        %873 = vmatprep.subr.bf16.mxu0 0
        %874 = vmatpush1.bf16.msra.mxu0 0
        %875 = vmatprep.subr.bf16.mxu0 0
        %876 = vmatpush1.bf16.msra.mxu0 0
        %877 = vmatprep.subr.bf16.mxu0 0
        %878 = vmatpush1.bf16.msra.mxu0 0
        %879 = vmatprep.subr.bf16.mxu0 0
        %880 = vmatpush1.bf16.msra.mxu0 %v860
        %881 = vmatprep.subr.bf16.mxu0 0
        %882 = vmatpush1.bf16.msra.mxu0 %v859
        %883 = vmatprep.subr.bf16.mxu0 0
        %884 = vmatpush2.bf16.msra.mxu0 0
        %885 = vmatprep.subr.bf16.mxu0 0
        %886 = vmatpush2.bf16.msra.mxu0 0
        %887 = vmatprep.subr.bf16.mxu0 0
        %888 = vmatpush2.bf16.msra.mxu0 0
        %889 = vmatprep.subr.bf16.mxu0 0
        %890 = vmatpush2.bf16.msra.mxu0 0
        %891 = vmatprep.subr.bf16.mxu0 0
        %892 = vmatpush2.bf16.msra.mxu0 0
        %893 = vmatprep.subr.bf16.mxu0 0
        %894 = vmatpush2.bf16.msra.mxu0 0
        %895 = vmatprep.subr.bf16.mxu0 0
        %896 = vmatpush2.bf16.msra.mxu0 0
        %897 = vmatprep.subr.bf16.mxu0 0
        %898 = vmatpush2.bf16.msra.mxu0 0
        %899 = vmatprep.mubr.bf16.mxu0 0
        %900 = vmatmul.mubr.bf16.gmra.mxu0 %v865
        %v901 = vpop.f32.mrf.mxu0
        %v902 = vadd.f32 %v849, %v901
        %v903 = vpop.f32.mrf.mxu0
        %v904 = vpop.f32.mrf.mxu0
        %v905 = vadd.f32 %v849, %v904
        %v906 = vpop.f32.mrf.mxu0
        %907 = vdwg.mxu0
        %v908 = vld [vmem:[%s786] sm:$0xf]
        %v909 = vld [vmem:[%s786 + $0x4] sm:$0xf]
        %v910 = vld [vmem:[%s786 + $0x8] sm:$0xf]
        %v911 = vld [vmem:[%s786 + $0xc] sm:$0xf]
        %v912 = vld [vmem:[%s802] sm:$0x1]
        %v914 = vlaneseq
        %v915 = vshrl.u32 %v914, 7
        %v916 = vsub.s32 0, %v915
        %v917 = vrot.slane %v912, %v916
        %v923 = vunpack.c.l.b16 %v908
        %v924 = vunpack.c.l.b16 %v909
        %v925 = vunpack.c.l.b16 %v910
        %v926 = vunpack.c.l.b16 %v911
        %v927 = vpack.c.b16 %v924, %v923
        %v928 = vpack.c.b16 %v926, %v925
        %931 = vmatprep.subr.bf16.mxu0 0
        %932 = vmatpush1.bf16.msra.mxu0 0
        %933 = vmatprep.subr.bf16.mxu0 0
        %934 = vmatpush1.bf16.msra.mxu0 0
        %935 = vmatprep.subr.bf16.mxu0 0
        %936 = vmatpush1.bf16.msra.mxu0 0
        %937 = vmatprep.subr.bf16.mxu0 0
        %938 = vmatpush1.bf16.msra.mxu0 0
        %939 = vmatprep.subr.bf16.mxu0 0
        %940 = vmatpush1.bf16.msra.mxu0 0
        %941 = vmatprep.subr.bf16.mxu0 0
        %942 = vmatpush1.bf16.msra.mxu0 0
        %943 = vmatprep.subr.bf16.mxu0 0
        %944 = vmatpush1.bf16.msra.mxu0 %v928
        %945 = vmatprep.subr.bf16.mxu0 0
        %946 = vmatpush1.bf16.msra.mxu0 %v927
        %947 = vmatprep.subr.bf16.mxu0 0
        %948 = vmatpush2.bf16.msra.mxu0 0
        %949 = vmatprep.subr.bf16.mxu0 0
        %950 = vmatpush2.bf16.msra.mxu0 0
        %951 = vmatprep.subr.bf16.mxu0 0
        %952 = vmatpush2.bf16.msra.mxu0 0
        %953 = vmatprep.subr.bf16.mxu0 0
        %954 = vmatpush2.bf16.msra.mxu0 0
        %955 = vmatprep.subr.bf16.mxu0 0
        %956 = vmatpush2.bf16.msra.mxu0 0
        %957 = vmatprep.subr.bf16.mxu0 0
        %958 = vmatpush2.bf16.msra.mxu0 0
        %959 = vmatprep.subr.bf16.mxu0 0
        %960 = vmatpush2.bf16.msra.mxu0 0
        %961 = vmatprep.subr.bf16.mxu0 0
        %962 = vmatpush2.bf16.msra.mxu0 0
        %963 = vmatprep.mubr.bf16.mxu0 0
        %964 = vmatmul.mubr.bf16.gmra.mxu0 %v865
        %v965 = vpop.f32.mrf.mxu0
        %v966 = vadd.f32 %v917, %v965
        %v967 = vpop.f32.mrf.mxu0
        %v968 = vpop.f32.mrf.mxu0
        %v969 = vadd.f32 %v917, %v968
        %v970 = vpop.f32.mrf.mxu0
        %971 = vdwg.mxu0
        %v972 = vld [vmem:[%s791] sm:$0xf]
        %v973 = vld [vmem:[%s791 + $0x4] sm:$0xf]
        %v974 = vld [vmem:[%s791 + $0x8] sm:$0xf]
        %v975 = vld [vmem:[%s791 + $0xc] sm:$0xf]
        %v976 = vld [vmem:[%s805] sm:$0x1]
        %v978 = vlaneseq
        %v979 = vshrl.u32 %v978, 7
        %v980 = vsub.s32 0, %v979
        %v981 = vrot.slane %v976, %v980
        %v987 = vunpack.c.l.b16 %v972
        %v988 = vunpack.c.l.b16 %v973
        %v989 = vunpack.c.l.b16 %v974
        %v990 = vunpack.c.l.b16 %v975
        %v991 = vpack.c.b16 %v988, %v987
        %v992 = vpack.c.b16 %v990, %v989
        %995 = vmatprep.subr.bf16.mxu0 0
        %996 = vmatpush1.bf16.msra.mxu0 0
        %997 = vmatprep.subr.bf16.mxu0 0
        %998 = vmatpush1.bf16.msra.mxu0 0
        %999 = vmatprep.subr.bf16.mxu0 0
        %1000 = vmatpush1.bf16.msra.mxu0 0
        %1001 = vmatprep.subr.bf16.mxu0 0
        %1002 = vmatpush1.bf16.msra.mxu0 0
        %1003 = vmatprep.subr.bf16.mxu0 0
        %1004 = vmatpush1.bf16.msra.mxu0 0
        %1005 = vmatprep.subr.bf16.mxu0 0
        %1006 = vmatpush1.bf16.msra.mxu0 0
        %1007 = vmatprep.subr.bf16.mxu0 0
        %1008 = vmatpush1.bf16.msra.mxu0 %v992
        %1009 = vmatprep.subr.bf16.mxu0 0
        %1010 = vmatpush1.bf16.msra.mxu0 %v991
        %1011 = vmatprep.subr.bf16.mxu0 0
        %1012 = vmatpush2.bf16.msra.mxu0 0
        %1013 = vmatprep.subr.bf16.mxu0 0
        %1014 = vmatpush2.bf16.msra.mxu0 0
        %1015 = vmatprep.subr.bf16.mxu0 0
        %1016 = vmatpush2.bf16.msra.mxu0 0
        %1017 = vmatprep.subr.bf16.mxu0 0
        %1018 = vmatpush2.bf16.msra.mxu0 0
        %1019 = vmatprep.subr.bf16.mxu0 0
        %1020 = vmatpush2.bf16.msra.mxu0 0
        %1021 = vmatprep.subr.bf16.mxu0 0
        %1022 = vmatpush2.bf16.msra.mxu0 0
        %1023 = vmatprep.subr.bf16.mxu0 0
        %1024 = vmatpush2.bf16.msra.mxu0 0
        %1025 = vmatprep.subr.bf16.mxu0 0
        %1026 = vmatpush2.bf16.msra.mxu0 0
        %1027 = vmatprep.mubr.bf16.mxu0 0
        %1028 = vmatmul.mubr.bf16.gmra.mxu0 %v865
        %v1029 = vpop.f32.mrf.mxu0
        %v1030 = vadd.f32 %v981, %v1029
        %v1031 = vpop.f32.mrf.mxu0
        %v1032 = vpop.f32.mrf.mxu0
        %v1033 = vadd.f32 %v981, %v1032
        %v1034 = vpop.f32.mrf.mxu0
        %1035 = vdwg.mxu0
        %v1036 = vld [vmem:[%s808] sm:$0x1]
        %v1038 = vlaneseq
        %v1039 = vshrl.u32 %v1038, 7
        %v1040 = vsub.s32 0, %v1039
        %v1041 = vrot.slane %v1036, %v1040
        %v1043 = vadd.f32 %v1041, 0.0
        %v1044 = vpack.c.bf16 %v902, %v902
        %v1045 = vpack.c.bf16 %v905, %v905
        %v1046 = vpack.c.bf16 %v966, %v966
        %v1047 = vpack.c.bf16 %v969, %v969
        %v1048 = vpack.c.bf16 %v1030, %v1030
        %v1049 = vpack.c.bf16 %v1033, %v1033
        %vm1050 = vcmask 64512
        %v1052 = vsel %vm1050, %v1044, 0
        %v1055 = vsel %vm1050, %v1046, 0
        %1057 = vmatprep.subr.bf16.mxu0 0
        %1058 = vmatpush1.bf16.xpose.msra.mxu0 0
        %1059 = vmatprep.subr.bf16.mxu0 0
        %1060 = vmatpush1.bf16.xpose.msra.mxu0 0
        %1061 = vmatprep.subr.bf16.mxu0 0
        %1062 = vmatpush1.bf16.xpose.msra.mxu0 0
        %1063 = vmatprep.subr.bf16.mxu0 0
        %1064 = vmatpush1.bf16.xpose.msra.mxu0 0
        %1065 = vmatprep.subr.bf16.mxu0 0
        %1066 = vmatpush1.bf16.xpose.msra.mxu0 0
        %1067 = vmatprep.subr.bf16.mxu0 0
        %1068 = vmatpush1.bf16.xpose.msra.mxu0 0
        %1069 = vmatprep.subr.bf16.mxu0 0
        %1070 = vmatpush1.bf16.xpose.msra.mxu0 0
        %1071 = vmatprep.subr.bf16.mxu0 0
        %1072 = vmatpush1.bf16.xpose.msra.mxu0 %v1055
        %1073 = vmatprep.subr.bf16.mxu0 0
        %1074 = vmatpush2.bf16.xpose.msra.mxu0 0
        %1075 = vmatprep.subr.bf16.mxu0 0
        %1076 = vmatpush2.bf16.xpose.msra.mxu0 0
        %1077 = vmatprep.subr.bf16.mxu0 0
        %1078 = vmatpush2.bf16.xpose.msra.mxu0 0
        %1079 = vmatprep.subr.bf16.mxu0 0
        %1080 = vmatpush2.bf16.xpose.msra.mxu0 0
        %1081 = vmatprep.subr.bf16.mxu0 0
        %1082 = vmatpush2.bf16.xpose.msra.mxu0 0
        %1083 = vmatprep.subr.bf16.mxu0 0
        %1084 = vmatpush2.bf16.xpose.msra.mxu0 0
        %1085 = vmatprep.subr.bf16.mxu0 0
        %1086 = vmatpush2.bf16.xpose.msra.mxu0 0
        %1087 = vmatprep.subr.bf16.mxu0 0
        %1088 = vmatpush2.bf16.xpose.msra.mxu0 0
        %1089 = vmatprep.mubr.bf16.mxu0 0
        %1090 = vmatmul.mubr.bf16.gmra.mxu0 %v1052
        %v1091 = vpop.f32.mrf.mxu0
        %v1092 = vadd.f32 0.0, %v1091
        %v1093 = vpop.f32.mrf.mxu0
        %v1094 = vpop.f32.mrf.mxu0
        %v1095 = vpop.f32.mrf.mxu0
        %1096 = vdwg.mxu0
        %v1098 = vsel %vm1050, %v1045, 0
        %v1101 = vsel %vm1050, %v1047, 0
        %1103 = vmatprep.subr.bf16.mxu0 0
        %1104 = vmatpush1.bf16.xpose.msra.mxu0 0
        %1105 = vmatprep.subr.bf16.mxu0 0
        %1106 = vmatpush1.bf16.xpose.msra.mxu0 0
        %1107 = vmatprep.subr.bf16.mxu0 0
        %1108 = vmatpush1.bf16.xpose.msra.mxu0 0
        %1109 = vmatprep.subr.bf16.mxu0 0
        %1110 = vmatpush1.bf16.xpose.msra.mxu0 0
        %1111 = vmatprep.subr.bf16.mxu0 0
        %1112 = vmatpush1.bf16.xpose.msra.mxu0 0
        %1113 = vmatprep.subr.bf16.mxu0 0
        %1114 = vmatpush1.bf16.xpose.msra.mxu0 0
        %1115 = vmatprep.subr.bf16.mxu0 0
        %1116 = vmatpush1.bf16.xpose.msra.mxu0 0
        %1117 = vmatprep.subr.bf16.mxu0 0
        %1118 = vmatpush1.bf16.xpose.msra.mxu0 %v1101
        %1119 = vmatprep.subr.bf16.mxu0 0
        %1120 = vmatpush2.bf16.xpose.msra.mxu0 0
        %1121 = vmatprep.subr.bf16.mxu0 0
        %1122 = vmatpush2.bf16.xpose.msra.mxu0 0
        %1123 = vmatprep.subr.bf16.mxu0 0
        %1124 = vmatpush2.bf16.xpose.msra.mxu0 0
        %1125 = vmatprep.subr.bf16.mxu0 0
        %1126 = vmatpush2.bf16.xpose.msra.mxu0 0
        %1127 = vmatprep.subr.bf16.mxu0 0
        %1128 = vmatpush2.bf16.xpose.msra.mxu0 0
        %1129 = vmatprep.subr.bf16.mxu0 0
        %1130 = vmatpush2.bf16.xpose.msra.mxu0 0
        %1131 = vmatprep.subr.bf16.mxu0 0
        %1132 = vmatpush2.bf16.xpose.msra.mxu0 0
        %1133 = vmatprep.subr.bf16.mxu0 0
        %1134 = vmatpush2.bf16.xpose.msra.mxu0 0
        %1135 = vmatprep.mubr.bf16.mxu0 0
        %1136 = vmatmul.mubr.bf16.gmra.mxu0 %v1098
        %v1137 = vpop.f32.mrf.mxu0
        %v1138 = vadd.f32 0.0, %v1137
        %v1139 = vpop.f32.mrf.mxu0
        %v1140 = vpop.f32.mrf.mxu0
        %v1141 = vpop.f32.mrf.mxu0
        %1142 = vdwg.mxu0
        %v1143 = vmul.f32 %v1092, 0.35355338
        %v1144 = vmul.f32 %v1138, 0.35355338
        %v1145 = vsel %vm1050, %v1143, -inf
        %1146 = vmax.xlane.f32.xlu0 %v1145
        %v1147 = vpop.xlane.xlu0 %1146
        %v1148 = vsel %vm1050, %v1144, -inf
        %1149 = vmax.xlane.f32.xlu0 %v1148
        %v1150 = vpop.xlane.xlu0 %1149
        %v1151 = vsub.f32 %v1143, %v1147
        %v1152 = vsub.f32 %v1144, %v1150
        %v1153 = vmul.f32 %v1151, 1.442695
        %v1154 = vpow.pop %v1153
        %v1155 = vmul.f32 %v1152, 1.442695
        %v1156 = vpow.pop %v1155
        %v1157 = vsel %vm1050, %v1154, 0.0
        %1158 = vadd.xlane.f32.xlu0 %v1157
        %v1159 = vpop.xlane.xlu0 %1158
        %v1160 = vsel %vm1050, %v1156, 0.0
        %1161 = vadd.xlane.f32.xlu0 %v1160
        %v1162 = vpop.xlane.xlu0 %1161
        %v1163 = vrcp.pop %v1159
        %v1164 = vrcp.pop %v1162
        %v1165 = vmul.f32 %v1154, %v1163
        %v1166 = vmul.f32 %v1156, %v1164
        %v1167 = vpack.c.bf16 %v1165, %v1165
        %v1168 = vpack.c.bf16 %v1166, %v1166
        %v1170 = vsel %vm1050, %v1167, 0
        %vm1172 = vcmask 1043456
        %v1174 = vsel %vm1172, %v1048, 0
        %1176 = vmatprep.subr.bf16.mxu0 0
        %1177 = vmatpush1.bf16.msra.mxu0 0
        %1178 = vmatprep.subr.bf16.mxu0 0
        %1179 = vmatpush1.bf16.msra.mxu0 0
        %1180 = vmatprep.subr.bf16.mxu0 0
        %1181 = vmatpush1.bf16.msra.mxu0 0
        %1182 = vmatprep.subr.bf16.mxu0 0
        %1183 = vmatpush1.bf16.msra.mxu0 0
        %1184 = vmatprep.subr.bf16.mxu0 0
        %1185 = vmatpush1.bf16.msra.mxu0 0
        %1186 = vmatprep.subr.bf16.mxu0 0
        %1187 = vmatpush1.bf16.msra.mxu0 0
        %1188 = vmatprep.subr.bf16.mxu0 0
        %1189 = vmatpush1.bf16.msra.mxu0 0
        %1190 = vmatprep.subr.bf16.mxu0 0
        %1191 = vmatpush1.bf16.msra.mxu0 %v1174
        %1192 = vmatprep.subr.bf16.mxu0 0
        %1193 = vmatpush2.bf16.msra.mxu0 0
        %1194 = vmatprep.subr.bf16.mxu0 0
        %1195 = vmatpush2.bf16.msra.mxu0 0
        %1196 = vmatprep.subr.bf16.mxu0 0
        %1197 = vmatpush2.bf16.msra.mxu0 0
        %1198 = vmatprep.subr.bf16.mxu0 0
        %1199 = vmatpush2.bf16.msra.mxu0 0
        %1200 = vmatprep.subr.bf16.mxu0 0
        %1201 = vmatpush2.bf16.msra.mxu0 0
        %1202 = vmatprep.subr.bf16.mxu0 0
        %1203 = vmatpush2.bf16.msra.mxu0 0
        %1204 = vmatprep.subr.bf16.mxu0 0
        %1205 = vmatpush2.bf16.msra.mxu0 0
        %1206 = vmatprep.subr.bf16.mxu0 0
        %1207 = vmatpush2.bf16.msra.mxu0 0
        %1208 = vmatprep.mubr.bf16.mxu0 0
        %1209 = vmatmul.mubr.bf16.gmra.mxu0 %v1170
        %v1210 = vpop.f32.mrf.mxu0
        %v1211 = vadd.f32 0.0, %v1210
        %v1212 = vpop.f32.mrf.mxu0
        %v1213 = vpop.f32.mrf.mxu0
        %v1214 = vpop.f32.mrf.mxu0
        %1215 = vdwg.mxu0
        %v1217 = vsel %vm1050, %v1168, 0
        %v1220 = vsel %vm1172, %v1049, 0
        %1222 = vmatprep.subr.bf16.mxu0 0
        %1223 = vmatpush1.bf16.msra.mxu0 0
        %1224 = vmatprep.subr.bf16.mxu0 0
        %1225 = vmatpush1.bf16.msra.mxu0 0
        %1226 = vmatprep.subr.bf16.mxu0 0
        %1227 = vmatpush1.bf16.msra.mxu0 0
        %1228 = vmatprep.subr.bf16.mxu0 0
        %1229 = vmatpush1.bf16.msra.mxu0 0
        %1230 = vmatprep.subr.bf16.mxu0 0
        %1231 = vmatpush1.bf16.msra.mxu0 0
        %1232 = vmatprep.subr.bf16.mxu0 0
        %1233 = vmatpush1.bf16.msra.mxu0 0
        %1234 = vmatprep.subr.bf16.mxu0 0
        %1235 = vmatpush1.bf16.msra.mxu0 0
        %1236 = vmatprep.subr.bf16.mxu0 0
        %1237 = vmatpush1.bf16.msra.mxu0 %v1220
        %1238 = vmatprep.subr.bf16.mxu0 0
        %1239 = vmatpush2.bf16.msra.mxu0 0
        %1240 = vmatprep.subr.bf16.mxu0 0
        %1241 = vmatpush2.bf16.msra.mxu0 0
        %1242 = vmatprep.subr.bf16.mxu0 0
        %1243 = vmatpush2.bf16.msra.mxu0 0
        %1244 = vmatprep.subr.bf16.mxu0 0
        %1245 = vmatpush2.bf16.msra.mxu0 0
        %1246 = vmatprep.subr.bf16.mxu0 0
        %1247 = vmatpush2.bf16.msra.mxu0 0
        %1248 = vmatprep.subr.bf16.mxu0 0
        %1249 = vmatpush2.bf16.msra.mxu0 0
        %1250 = vmatprep.subr.bf16.mxu0 0
        %1251 = vmatpush2.bf16.msra.mxu0 0
        %1252 = vmatprep.subr.bf16.mxu0 0
        %1253 = vmatpush2.bf16.msra.mxu0 0
        %1254 = vmatprep.mubr.bf16.mxu0 0
        %1255 = vmatmul.mubr.bf16.gmra.mxu0 %v1217
        %v1256 = vpop.f32.mrf.mxu0
        %v1257 = vadd.f32 0.0, %v1256
        %v1258 = vpop.f32.mrf.mxu0
        %v1259 = vpop.f32.mrf.mxu0
        %v1260 = vpop.f32.mrf.mxu0
        %1261 = vdwg.mxu0
        %v1262 = vpack.c.bf16 %v1257, %v1211
        %v1263 = vld [vmem:[%s667] sm:$0xf]
        %v1265 = vsel %vm1050, %v1262, 0
        %v1268 = vsel %vm1172, %v1263, 0
        %1270 = vmatprep.subr.bf16.mxu0 0
        %1271 = vmatpush1.bf16.msra.mxu0 0
        %1272 = vmatprep.subr.bf16.mxu0 0
        %1273 = vmatpush1.bf16.msra.mxu0 0
        %1274 = vmatprep.subr.bf16.mxu0 0
        %1275 = vmatpush1.bf16.msra.mxu0 0
        %1276 = vmatprep.subr.bf16.mxu0 0
        %1277 = vmatpush1.bf16.msra.mxu0 0
        %1278 = vmatprep.subr.bf16.mxu0 0
        %1279 = vmatpush1.bf16.msra.mxu0 0
        %1280 = vmatprep.subr.bf16.mxu0 0
        %1281 = vmatpush1.bf16.msra.mxu0 0
        %1282 = vmatprep.subr.bf16.mxu0 0
        %1283 = vmatpush1.bf16.msra.mxu0 0
        %1284 = vmatprep.subr.bf16.mxu0 0
        %1285 = vmatpush1.bf16.msra.mxu0 %v1268
        %1286 = vmatprep.subr.bf16.mxu0 0
        %1287 = vmatpush2.bf16.msra.mxu0 0
        %1288 = vmatprep.subr.bf16.mxu0 0
        %1289 = vmatpush2.bf16.msra.mxu0 0
        %1290 = vmatprep.subr.bf16.mxu0 0
        %1291 = vmatpush2.bf16.msra.mxu0 0
        %1292 = vmatprep.subr.bf16.mxu0 0
        %1293 = vmatpush2.bf16.msra.mxu0 0
        %1294 = vmatprep.subr.bf16.mxu0 0
        %1295 = vmatpush2.bf16.msra.mxu0 0
        %1296 = vmatprep.subr.bf16.mxu0 0
        %1297 = vmatpush2.bf16.msra.mxu0 0
        %1298 = vmatprep.subr.bf16.mxu0 0
        %1299 = vmatpush2.bf16.msra.mxu0 0
        %1300 = vmatprep.subr.bf16.mxu0 0
        %1301 = vmatpush2.bf16.msra.mxu0 0
        %1302 = vmatprep.mubr.bf16.mxu0 0
        %1303 = vmatmul.mubr.bf16.gmra.mxu0 %v1265
        %v1304 = vpop.f32.mrf.mxu0
        %v1305 = vadd.f32 0.0, %v1304
        %v1306 = vpop.f32.mrf.mxu0
        %v1307 = vpop.f32.mrf.mxu0
        %v1308 = vadd.f32 0.0, %v1307
        %v1309 = vpop.f32.mrf.mxu0
        %1310 = vdwg.mxu0
        %v1311 = vadd.f32 %v1043, %v1305
        %v1312 = vadd.f32 %v1043, %v1308
        %1314 = vrot.lane.b32.xlu0 %v1044, 120
        %v1315 = vpop.permute.xlu0 %1314
        %1317 = vrot.lane.b32.xlu0 %v1046, 120
        %v1318 = vpop.permute.xlu0 %1317
        %v1320 = vsel %vm1050, %v1315, 0
        %v1323 = vsel %vm1050, %v1318, 0
        %1325 = vmatprep.subr.bf16.mxu0 0
        %1326 = vmatpush1.bf16.xpose.msra.mxu0 0
        %1327 = vmatprep.subr.bf16.mxu0 0
        %1328 = vmatpush1.bf16.xpose.msra.mxu0 0
        %1329 = vmatprep.subr.bf16.mxu0 0
        %1330 = vmatpush1.bf16.xpose.msra.mxu0 0
        %1331 = vmatprep.subr.bf16.mxu0 0
        %1332 = vmatpush1.bf16.xpose.msra.mxu0 0
        %1333 = vmatprep.subr.bf16.mxu0 0
        %1334 = vmatpush1.bf16.xpose.msra.mxu0 0
        %1335 = vmatprep.subr.bf16.mxu0 0
        %1336 = vmatpush1.bf16.xpose.msra.mxu0 0
        %1337 = vmatprep.subr.bf16.mxu0 0
        %1338 = vmatpush1.bf16.xpose.msra.mxu0 0
        %1339 = vmatprep.subr.bf16.mxu0 0
        %1340 = vmatpush1.bf16.xpose.msra.mxu0 %v1323
        %1341 = vmatprep.subr.bf16.mxu0 0
        %1342 = vmatpush2.bf16.xpose.msra.mxu0 0
        %1343 = vmatprep.subr.bf16.mxu0 0
        %1344 = vmatpush2.bf16.xpose.msra.mxu0 0
        %1345 = vmatprep.subr.bf16.mxu0 0
        %1346 = vmatpush2.bf16.xpose.msra.mxu0 0
        %1347 = vmatprep.subr.bf16.mxu0 0
        %1348 = vmatpush2.bf16.xpose.msra.mxu0 0
        %1349 = vmatprep.subr.bf16.mxu0 0
        %1350 = vmatpush2.bf16.xpose.msra.mxu0 0
        %1351 = vmatprep.subr.bf16.mxu0 0
        %1352 = vmatpush2.bf16.xpose.msra.mxu0 0
        %1353 = vmatprep.subr.bf16.mxu0 0
        %1354 = vmatpush2.bf16.xpose.msra.mxu0 0
        %1355 = vmatprep.subr.bf16.mxu0 0
        %1356 = vmatpush2.bf16.xpose.msra.mxu0 0
        %1357 = vmatprep.mubr.bf16.mxu0 0
        %1358 = vmatmul.mubr.bf16.gmra.mxu0 %v1320
        %v1359 = vpop.f32.mrf.mxu0
        %v1360 = vadd.f32 0.0, %v1359
        %v1361 = vpop.f32.mrf.mxu0
        %v1362 = vpop.f32.mrf.mxu0
        %v1363 = vpop.f32.mrf.mxu0
        %1364 = vdwg.mxu0
        %1366 = vrot.lane.b32.xlu0 %v1045, 120
        %v1367 = vpop.permute.xlu0 %1366
        %1369 = vrot.lane.b32.xlu0 %v1047, 120
        %v1370 = vpop.permute.xlu0 %1369
        %v1372 = vsel %vm1050, %v1367, 0
        %v1375 = vsel %vm1050, %v1370, 0
        %1377 = vmatprep.subr.bf16.mxu0 0
        %1378 = vmatpush1.bf16.xpose.msra.mxu0 0
        %1379 = vmatprep.subr.bf16.mxu0 0
        %1380 = vmatpush1.bf16.xpose.msra.mxu0 0
        %1381 = vmatprep.subr.bf16.mxu0 0
        %1382 = vmatpush1.bf16.xpose.msra.mxu0 0
        %1383 = vmatprep.subr.bf16.mxu0 0
        %1384 = vmatpush1.bf16.xpose.msra.mxu0 0
        %1385 = vmatprep.subr.bf16.mxu0 0
        %1386 = vmatpush1.bf16.xpose.msra.mxu0 0
        %1387 = vmatprep.subr.bf16.mxu0 0
        %1388 = vmatpush1.bf16.xpose.msra.mxu0 0
        %1389 = vmatprep.subr.bf16.mxu0 0
        %1390 = vmatpush1.bf16.xpose.msra.mxu0 0
        %1391 = vmatprep.subr.bf16.mxu0 0
        %1392 = vmatpush1.bf16.xpose.msra.mxu0 %v1375
        %1393 = vmatprep.subr.bf16.mxu0 0
        %1394 = vmatpush2.bf16.xpose.msra.mxu0 0
        %1395 = vmatprep.subr.bf16.mxu0 0
        %1396 = vmatpush2.bf16.xpose.msra.mxu0 0
        %1397 = vmatprep.subr.bf16.mxu0 0
        %1398 = vmatpush2.bf16.xpose.msra.mxu0 0
        %1399 = vmatprep.subr.bf16.mxu0 0
        %1400 = vmatpush2.bf16.xpose.msra.mxu0 0
        %1401 = vmatprep.subr.bf16.mxu0 0
        %1402 = vmatpush2.bf16.xpose.msra.mxu0 0
        %1403 = vmatprep.subr.bf16.mxu0 0
        %1404 = vmatpush2.bf16.xpose.msra.mxu0 0
        %1405 = vmatprep.subr.bf16.mxu0 0
        %1406 = vmatpush2.bf16.xpose.msra.mxu0 0
        %1407 = vmatprep.subr.bf16.mxu0 0
        %1408 = vmatpush2.bf16.xpose.msra.mxu0 0
        %1409 = vmatprep.mubr.bf16.mxu0 0
        %1410 = vmatmul.mubr.bf16.gmra.mxu0 %v1372
        %v1411 = vpop.f32.mrf.mxu0
        %v1412 = vadd.f32 0.0, %v1411
        %v1413 = vpop.f32.mrf.mxu0
        %v1414 = vpop.f32.mrf.mxu0
        %v1415 = vpop.f32.mrf.mxu0
        %1416 = vdwg.mxu0
        %v1417 = vmul.f32 %v1360, 0.35355338
        %v1418 = vmul.f32 %v1412, 0.35355338
        %v1419 = vsel %vm1050, %v1417, -inf
        %1420 = vmax.xlane.f32.xlu0 %v1419
        %v1421 = vpop.xlane.xlu0 %1420
        %v1422 = vsel %vm1050, %v1418, -inf
        %1423 = vmax.xlane.f32.xlu0 %v1422
        %v1424 = vpop.xlane.xlu0 %1423
        %v1425 = vsub.f32 %v1417, %v1421
        %v1426 = vsub.f32 %v1418, %v1424
        %v1427 = vmul.f32 %v1425, 1.442695
        %v1428 = vpow.pop %v1427
        %v1429 = vmul.f32 %v1426, 1.442695
        %v1430 = vpow.pop %v1429
        %v1431 = vsel %vm1050, %v1428, 0.0
        %1432 = vadd.xlane.f32.xlu0 %v1431
        %v1433 = vpop.xlane.xlu0 %1432
        %v1434 = vsel %vm1050, %v1430, 0.0
        %1435 = vadd.xlane.f32.xlu0 %v1434
        %v1436 = vpop.xlane.xlu0 %1435
        %v1437 = vrcp.pop %v1433
        %v1438 = vrcp.pop %v1436
        %v1439 = vmul.f32 %v1428, %v1437
        %v1440 = vmul.f32 %v1430, %v1438
        %v1441 = vpack.c.bf16 %v1439, %v1439
        %v1442 = vpack.c.bf16 %v1440, %v1440
        %1444 = vrot.lane.b32.xlu0 %v1048, 120
        %v1445 = vpop.permute.xlu0 %1444
        %v1447 = vsel %vm1050, %v1441, 0
        %v1450 = vsel %vm1172, %v1445, 0
        %1452 = vmatprep.subr.bf16.mxu0 0
        %1453 = vmatpush1.bf16.msra.mxu0 0
        %1454 = vmatprep.subr.bf16.mxu0 0
        %1455 = vmatpush1.bf16.msra.mxu0 0
        %1456 = vmatprep.subr.bf16.mxu0 0
        %1457 = vmatpush1.bf16.msra.mxu0 0
        %1458 = vmatprep.subr.bf16.mxu0 0
        %1459 = vmatpush1.bf16.msra.mxu0 0
        %1460 = vmatprep.subr.bf16.mxu0 0
        %1461 = vmatpush1.bf16.msra.mxu0 0
        %1462 = vmatprep.subr.bf16.mxu0 0
        %1463 = vmatpush1.bf16.msra.mxu0 0
        %1464 = vmatprep.subr.bf16.mxu0 0
        %1465 = vmatpush1.bf16.msra.mxu0 0
        %1466 = vmatprep.subr.bf16.mxu0 0
        %1467 = vmatpush1.bf16.msra.mxu0 %v1450
        %1468 = vmatprep.subr.bf16.mxu0 0
        %1469 = vmatpush2.bf16.msra.mxu0 0
        %1470 = vmatprep.subr.bf16.mxu0 0
        %1471 = vmatpush2.bf16.msra.mxu0 0
        %1472 = vmatprep.subr.bf16.mxu0 0
        %1473 = vmatpush2.bf16.msra.mxu0 0
        %1474 = vmatprep.subr.bf16.mxu0 0
        %1475 = vmatpush2.bf16.msra.mxu0 0
        %1476 = vmatprep.subr.bf16.mxu0 0
        %1477 = vmatpush2.bf16.msra.mxu0 0
        %1478 = vmatprep.subr.bf16.mxu0 0
        %1479 = vmatpush2.bf16.msra.mxu0 0
        %1480 = vmatprep.subr.bf16.mxu0 0
        %1481 = vmatpush2.bf16.msra.mxu0 0
        %1482 = vmatprep.subr.bf16.mxu0 0
        %1483 = vmatpush2.bf16.msra.mxu0 0
        %1484 = vmatprep.mubr.bf16.mxu0 0
        %1485 = vmatmul.mubr.bf16.gmra.mxu0 %v1447
        %v1486 = vpop.f32.mrf.mxu0
        %v1487 = vadd.f32 0.0, %v1486
        %v1488 = vpop.f32.mrf.mxu0
        %v1489 = vpop.f32.mrf.mxu0
        %v1490 = vpop.f32.mrf.mxu0
        %1491 = vdwg.mxu0
        %1493 = vrot.lane.b32.xlu0 %v1049, 120
        %v1494 = vpop.permute.xlu0 %1493
        %v1496 = vsel %vm1050, %v1442, 0
        %v1499 = vsel %vm1172, %v1494, 0
        %1501 = vmatprep.subr.bf16.mxu0 0
        %1502 = vmatpush1.bf16.msra.mxu0 0
        %1503 = vmatprep.subr.bf16.mxu0 0
        %1504 = vmatpush1.bf16.msra.mxu0 0
        %1505 = vmatprep.subr.bf16.mxu0 0
        %1506 = vmatpush1.bf16.msra.mxu0 0
        %1507 = vmatprep.subr.bf16.mxu0 0
        %1508 = vmatpush1.bf16.msra.mxu0 0
        %1509 = vmatprep.subr.bf16.mxu0 0
        %1510 = vmatpush1.bf16.msra.mxu0 0
        %1511 = vmatprep.subr.bf16.mxu0 0
        %1512 = vmatpush1.bf16.msra.mxu0 0
        %1513 = vmatprep.subr.bf16.mxu0 0
        %1514 = vmatpush1.bf16.msra.mxu0 0
        %1515 = vmatprep.subr.bf16.mxu0 0
        %1516 = vmatpush1.bf16.msra.mxu0 %v1499
        %1517 = vmatprep.subr.bf16.mxu0 0
        %1518 = vmatpush2.bf16.msra.mxu0 0
        %1519 = vmatprep.subr.bf16.mxu0 0
        %1520 = vmatpush2.bf16.msra.mxu0 0
        %1521 = vmatprep.subr.bf16.mxu0 0
        %1522 = vmatpush2.bf16.msra.mxu0 0
        %1523 = vmatprep.subr.bf16.mxu0 0
        %1524 = vmatpush2.bf16.msra.mxu0 0
        %1525 = vmatprep.subr.bf16.mxu0 0
        %1526 = vmatpush2.bf16.msra.mxu0 0
        %1527 = vmatprep.subr.bf16.mxu0 0
        %1528 = vmatpush2.bf16.msra.mxu0 0
        %1529 = vmatprep.subr.bf16.mxu0 0
        %1530 = vmatpush2.bf16.msra.mxu0 0
        %1531 = vmatprep.subr.bf16.mxu0 0
        %1532 = vmatpush2.bf16.msra.mxu0 0
        %1533 = vmatprep.mubr.bf16.mxu0 0
        %1534 = vmatmul.mubr.bf16.gmra.mxu0 %v1496
        %v1535 = vpop.f32.mrf.mxu0
        %v1536 = vadd.f32 0.0, %v1535
        %v1537 = vpop.f32.mrf.mxu0
        %v1538 = vpop.f32.mrf.mxu0
        %v1539 = vpop.f32.mrf.mxu0
        %1540 = vdwg.mxu0
        %v1541 = vpack.c.bf16 %v1536, %v1487
        %s1542 = scalar_lea.vmem %s667, 4 [#allocation6]
        %v1543 = vld [vmem:[%s1542] sm:$0xf]
        %v1545 = vsel %vm1050, %v1541, 0
        %v1548 = vsel %vm1172, %v1543, 0
        %1550 = vmatprep.subr.bf16.mxu0 0
        %1551 = vmatpush1.bf16.msra.mxu0 0
        %1552 = vmatprep.subr.bf16.mxu0 0
        %1553 = vmatpush1.bf16.msra.mxu0 0
        %1554 = vmatprep.subr.bf16.mxu0 0
        %1555 = vmatpush1.bf16.msra.mxu0 0
        %1556 = vmatprep.subr.bf16.mxu0 0
        %1557 = vmatpush1.bf16.msra.mxu0 0
        %1558 = vmatprep.subr.bf16.mxu0 0
        %1559 = vmatpush1.bf16.msra.mxu0 0
        %1560 = vmatprep.subr.bf16.mxu0 0
        %1561 = vmatpush1.bf16.msra.mxu0 0
        %1562 = vmatprep.subr.bf16.mxu0 0
        %1563 = vmatpush1.bf16.msra.mxu0 0
        %1564 = vmatprep.subr.bf16.mxu0 0
        %1565 = vmatpush1.bf16.msra.mxu0 %v1548
        %1566 = vmatprep.subr.bf16.mxu0 0
        %1567 = vmatpush2.bf16.msra.mxu0 0
        %1568 = vmatprep.subr.bf16.mxu0 0
        %1569 = vmatpush2.bf16.msra.mxu0 0
        %1570 = vmatprep.subr.bf16.mxu0 0
        %1571 = vmatpush2.bf16.msra.mxu0 0
        %1572 = vmatprep.subr.bf16.mxu0 0
        %1573 = vmatpush2.bf16.msra.mxu0 0
        %1574 = vmatprep.subr.bf16.mxu0 0
        %1575 = vmatpush2.bf16.msra.mxu0 0
        %1576 = vmatprep.subr.bf16.mxu0 0
        %1577 = vmatpush2.bf16.msra.mxu0 0
        %1578 = vmatprep.subr.bf16.mxu0 0
        %1579 = vmatpush2.bf16.msra.mxu0 0
        %1580 = vmatprep.subr.bf16.mxu0 0
        %1581 = vmatpush2.bf16.msra.mxu0 0
        %1582 = vmatprep.mubr.bf16.mxu0 0
        %1583 = vmatmul.mubr.bf16.gmra.mxu0 %v1545
        %v1584 = vpop.f32.mrf.mxu0
        %v1585 = vadd.f32 0.0, %v1584
        %v1586 = vpop.f32.mrf.mxu0
        %v1587 = vpop.f32.mrf.mxu0
        %v1588 = vadd.f32 0.0, %v1587
        %v1589 = vpop.f32.mrf.mxu0
        %1590 = vdwg.mxu0
        %v1591 = vadd.f32 %v1311, %v1585
        %v1592 = vadd.f32 %v1312, %v1588
        %1593 = vrot.lane.b32.xlu0 %v1044, 112
        %v1594 = vpop.permute.xlu0 %1593
        %1595 = vrot.lane.b32.xlu0 %v1046, 112
        %v1596 = vpop.permute.xlu0 %1595
        %v1598 = vsel %vm1050, %v1594, 0
        %v1601 = vsel %vm1050, %v1596, 0
        %1603 = vmatprep.subr.bf16.mxu0 0
        %1604 = vmatpush1.bf16.xpose.msra.mxu0 0
        %1605 = vmatprep.subr.bf16.mxu0 0
        %1606 = vmatpush1.bf16.xpose.msra.mxu0 0
        %1607 = vmatprep.subr.bf16.mxu0 0
        %1608 = vmatpush1.bf16.xpose.msra.mxu0 0
        %1609 = vmatprep.subr.bf16.mxu0 0
        %1610 = vmatpush1.bf16.xpose.msra.mxu0 0
        %1611 = vmatprep.subr.bf16.mxu0 0
        %1612 = vmatpush1.bf16.xpose.msra.mxu0 0
        %1613 = vmatprep.subr.bf16.mxu0 0
        %1614 = vmatpush1.bf16.xpose.msra.mxu0 0
        %1615 = vmatprep.subr.bf16.mxu0 0
        %1616 = vmatpush1.bf16.xpose.msra.mxu0 0
        %1617 = vmatprep.subr.bf16.mxu0 0
        %1618 = vmatpush1.bf16.xpose.msra.mxu0 %v1601
        %1619 = vmatprep.subr.bf16.mxu0 0
        %1620 = vmatpush2.bf16.xpose.msra.mxu0 0
        %1621 = vmatprep.subr.bf16.mxu0 0
        %1622 = vmatpush2.bf16.xpose.msra.mxu0 0
        %1623 = vmatprep.subr.bf16.mxu0 0
        %1624 = vmatpush2.bf16.xpose.msra.mxu0 0
        %1625 = vmatprep.subr.bf16.mxu0 0
        %1626 = vmatpush2.bf16.xpose.msra.mxu0 0
        %1627 = vmatprep.subr.bf16.mxu0 0
        %1628 = vmatpush2.bf16.xpose.msra.mxu0 0
        %1629 = vmatprep.subr.bf16.mxu0 0
        %1630 = vmatpush2.bf16.xpose.msra.mxu0 0
        %1631 = vmatprep.subr.bf16.mxu0 0
        %1632 = vmatpush2.bf16.xpose.msra.mxu0 0
        %1633 = vmatprep.subr.bf16.mxu0 0
        %1634 = vmatpush2.bf16.xpose.msra.mxu0 0
        %1635 = vmatprep.mubr.bf16.mxu0 0
        %1636 = vmatmul.mubr.bf16.gmra.mxu0 %v1598
        %v1637 = vpop.f32.mrf.mxu0
        %v1638 = vadd.f32 0.0, %v1637
        %v1639 = vpop.f32.mrf.mxu0
        %v1640 = vpop.f32.mrf.mxu0
        %v1641 = vpop.f32.mrf.mxu0
        %1642 = vdwg.mxu0
        %1643 = vrot.lane.b32.xlu0 %v1045, 112
        %v1644 = vpop.permute.xlu0 %1643
        %1645 = vrot.lane.b32.xlu0 %v1047, 112
        %v1646 = vpop.permute.xlu0 %1645
        %v1648 = vsel %vm1050, %v1644, 0
        %v1651 = vsel %vm1050, %v1646, 0
        %1653 = vmatprep.subr.bf16.mxu0 0
        %1654 = vmatpush1.bf16.xpose.msra.mxu0 0
        %1655 = vmatprep.subr.bf16.mxu0 0
        %1656 = vmatpush1.bf16.xpose.msra.mxu0 0
        %1657 = vmatprep.subr.bf16.mxu0 0
        %1658 = vmatpush1.bf16.xpose.msra.mxu0 0
        %1659 = vmatprep.subr.bf16.mxu0 0
        %1660 = vmatpush1.bf16.xpose.msra.mxu0 0
        %1661 = vmatprep.subr.bf16.mxu0 0
        %1662 = vmatpush1.bf16.xpose.msra.mxu0 0
        %1663 = vmatprep.subr.bf16.mxu0 0
        %1664 = vmatpush1.bf16.xpose.msra.mxu0 0
        %1665 = vmatprep.subr.bf16.mxu0 0
        %1666 = vmatpush1.bf16.xpose.msra.mxu0 0
        %1667 = vmatprep.subr.bf16.mxu0 0
        %1668 = vmatpush1.bf16.xpose.msra.mxu0 %v1651
        %1669 = vmatprep.subr.bf16.mxu0 0
        %1670 = vmatpush2.bf16.xpose.msra.mxu0 0
        %1671 = vmatprep.subr.bf16.mxu0 0
        %1672 = vmatpush2.bf16.xpose.msra.mxu0 0
        %1673 = vmatprep.subr.bf16.mxu0 0
        %1674 = vmatpush2.bf16.xpose.msra.mxu0 0
        %1675 = vmatprep.subr.bf16.mxu0 0
        %1676 = vmatpush2.bf16.xpose.msra.mxu0 0
        %1677 = vmatprep.subr.bf16.mxu0 0
        %1678 = vmatpush2.bf16.xpose.msra.mxu0 0
        %1679 = vmatprep.subr.bf16.mxu0 0
        %1680 = vmatpush2.bf16.xpose.msra.mxu0 0
        %1681 = vmatprep.subr.bf16.mxu0 0
        %1682 = vmatpush2.bf16.xpose.msra.mxu0 0
        %1683 = vmatprep.subr.bf16.mxu0 0
        %1684 = vmatpush2.bf16.xpose.msra.mxu0 0
        %1685 = vmatprep.mubr.bf16.mxu0 0
        %1686 = vmatmul.mubr.bf16.gmra.mxu0 %v1648
        %v1687 = vpop.f32.mrf.mxu0
        %v1688 = vadd.f32 0.0, %v1687
        %v1689 = vpop.f32.mrf.mxu0
        %v1690 = vpop.f32.mrf.mxu0
        %v1691 = vpop.f32.mrf.mxu0
        %1692 = vdwg.mxu0
        %v1693 = vmul.f32 %v1638, 0.35355338
        %v1694 = vmul.f32 %v1688, 0.35355338
        %v1695 = vsel %vm1050, %v1693, -inf
        %1696 = vmax.xlane.f32.xlu0 %v1695
        %v1697 = vpop.xlane.xlu0 %1696
        %v1698 = vsel %vm1050, %v1694, -inf
        %1699 = vmax.xlane.f32.xlu0 %v1698
        %v1700 = vpop.xlane.xlu0 %1699
        %v1701 = vsub.f32 %v1693, %v1697
        %v1702 = vsub.f32 %v1694, %v1700
        %v1703 = vmul.f32 %v1701, 1.442695
        %v1704 = vpow.pop %v1703
        %v1705 = vmul.f32 %v1702, 1.442695
        %v1706 = vpow.pop %v1705
        %v1707 = vsel %vm1050, %v1704, 0.0
        %1708 = vadd.xlane.f32.xlu0 %v1707
        %v1709 = vpop.xlane.xlu0 %1708
        %v1710 = vsel %vm1050, %v1706, 0.0
        %1711 = vadd.xlane.f32.xlu0 %v1710
        %v1712 = vpop.xlane.xlu0 %1711
        %v1713 = vrcp.pop %v1709
        %v1714 = vrcp.pop %v1712
        %v1715 = vmul.f32 %v1704, %v1713
        %v1716 = vmul.f32 %v1706, %v1714
        %v1717 = vpack.c.bf16 %v1715, %v1715
        %v1718 = vpack.c.bf16 %v1716, %v1716
        %1719 = vrot.lane.b32.xlu0 %v1048, 112
        %v1720 = vpop.permute.xlu0 %1719
        %v1722 = vsel %vm1050, %v1717, 0
        %v1725 = vsel %vm1172, %v1720, 0
        %1727 = vmatprep.subr.bf16.mxu0 0
        %1728 = vmatpush1.bf16.msra.mxu0 0
        %1729 = vmatprep.subr.bf16.mxu0 0
        %1730 = vmatpush1.bf16.msra.mxu0 0
        %1731 = vmatprep.subr.bf16.mxu0 0
        %1732 = vmatpush1.bf16.msra.mxu0 0
        %1733 = vmatprep.subr.bf16.mxu0 0
        %1734 = vmatpush1.bf16.msra.mxu0 0
        %1735 = vmatprep.subr.bf16.mxu0 0
        %1736 = vmatpush1.bf16.msra.mxu0 0
        %1737 = vmatprep.subr.bf16.mxu0 0
        %1738 = vmatpush1.bf16.msra.mxu0 0
        %1739 = vmatprep.subr.bf16.mxu0 0
        %1740 = vmatpush1.bf16.msra.mxu0 0
        %1741 = vmatprep.subr.bf16.mxu0 0
        %1742 = vmatpush1.bf16.msra.mxu0 %v1725
        %1743 = vmatprep.subr.bf16.mxu0 0
        %1744 = vmatpush2.bf16.msra.mxu0 0
        %1745 = vmatprep.subr.bf16.mxu0 0
        %1746 = vmatpush2.bf16.msra.mxu0 0
        %1747 = vmatprep.subr.bf16.mxu0 0
        %1748 = vmatpush2.bf16.msra.mxu0 0
        %1749 = vmatprep.subr.bf16.mxu0 0
        %1750 = vmatpush2.bf16.msra.mxu0 0
        %1751 = vmatprep.subr.bf16.mxu0 0
        %1752 = vmatpush2.bf16.msra.mxu0 0
        %1753 = vmatprep.subr.bf16.mxu0 0
        %1754 = vmatpush2.bf16.msra.mxu0 0
        %1755 = vmatprep.subr.bf16.mxu0 0
        %1756 = vmatpush2.bf16.msra.mxu0 0
        %1757 = vmatprep.subr.bf16.mxu0 0
        %1758 = vmatpush2.bf16.msra.mxu0 0
        %1759 = vmatprep.mubr.bf16.mxu0 0
        %1760 = vmatmul.mubr.bf16.gmra.mxu0 %v1722
        %v1761 = vpop.f32.mrf.mxu0
        %v1762 = vadd.f32 0.0, %v1761
        %v1763 = vpop.f32.mrf.mxu0
        %v1764 = vpop.f32.mrf.mxu0
        %v1765 = vpop.f32.mrf.mxu0
        %1766 = vdwg.mxu0
        %1767 = vrot.lane.b32.xlu0 %v1049, 112
        %v1768 = vpop.permute.xlu0 %1767
        %v1770 = vsel %vm1050, %v1718, 0
        %v1773 = vsel %vm1172, %v1768, 0
        %1775 = vmatprep.subr.bf16.mxu0 0
        %1776 = vmatpush1.bf16.msra.mxu0 0
        %1777 = vmatprep.subr.bf16.mxu0 0
        %1778 = vmatpush1.bf16.msra.mxu0 0
        %1779 = vmatprep.subr.bf16.mxu0 0
        %1780 = vmatpush1.bf16.msra.mxu0 0
        %1781 = vmatprep.subr.bf16.mxu0 0
        %1782 = vmatpush1.bf16.msra.mxu0 0
        %1783 = vmatprep.subr.bf16.mxu0 0
        %1784 = vmatpush1.bf16.msra.mxu0 0
        %1785 = vmatprep.subr.bf16.mxu0 0
        %1786 = vmatpush1.bf16.msra.mxu0 0
        %1787 = vmatprep.subr.bf16.mxu0 0
        %1788 = vmatpush1.bf16.msra.mxu0 0
        %1789 = vmatprep.subr.bf16.mxu0 0
        %1790 = vmatpush1.bf16.msra.mxu0 %v1773
        %1791 = vmatprep.subr.bf16.mxu0 0
        %1792 = vmatpush2.bf16.msra.mxu0 0
        %1793 = vmatprep.subr.bf16.mxu0 0
        %1794 = vmatpush2.bf16.msra.mxu0 0
        %1795 = vmatprep.subr.bf16.mxu0 0
        %1796 = vmatpush2.bf16.msra.mxu0 0
        %1797 = vmatprep.subr.bf16.mxu0 0
        %1798 = vmatpush2.bf16.msra.mxu0 0
        %1799 = vmatprep.subr.bf16.mxu0 0
        %1800 = vmatpush2.bf16.msra.mxu0 0
        %1801 = vmatprep.subr.bf16.mxu0 0
        %1802 = vmatpush2.bf16.msra.mxu0 0
        %1803 = vmatprep.subr.bf16.mxu0 0
        %1804 = vmatpush2.bf16.msra.mxu0 0
        %1805 = vmatprep.subr.bf16.mxu0 0
        %1806 = vmatpush2.bf16.msra.mxu0 0
        %1807 = vmatprep.mubr.bf16.mxu0 0
        %1808 = vmatmul.mubr.bf16.gmra.mxu0 %v1770
        %v1809 = vpop.f32.mrf.mxu0
        %v1810 = vadd.f32 0.0, %v1809
        %v1811 = vpop.f32.mrf.mxu0
        %v1812 = vpop.f32.mrf.mxu0
        %v1813 = vpop.f32.mrf.mxu0
        %1814 = vdwg.mxu0
        %v1815 = vpack.c.bf16 %v1810, %v1762
        %s1816 = scalar_lea.vmem %s667, 8 [#allocation6]
        %v1817 = vld [vmem:[%s1816] sm:$0xf]
        %v1819 = vsel %vm1050, %v1815, 0
        %v1822 = vsel %vm1172, %v1817, 0
        %1824 = vmatprep.subr.bf16.mxu0 0
        %1825 = vmatpush1.bf16.msra.mxu0 0
        %1826 = vmatprep.subr.bf16.mxu0 0
        %1827 = vmatpush1.bf16.msra.mxu0 0
        %1828 = vmatprep.subr.bf16.mxu0 0
        %1829 = vmatpush1.bf16.msra.mxu0 0
        %1830 = vmatprep.subr.bf16.mxu0 0
        %1831 = vmatpush1.bf16.msra.mxu0 0
        %1832 = vmatprep.subr.bf16.mxu0 0
        %1833 = vmatpush1.bf16.msra.mxu0 0
        %1834 = vmatprep.subr.bf16.mxu0 0
        %1835 = vmatpush1.bf16.msra.mxu0 0
        %1836 = vmatprep.subr.bf16.mxu0 0
        %1837 = vmatpush1.bf16.msra.mxu0 0
        %1838 = vmatprep.subr.bf16.mxu0 0
        %1839 = vmatpush1.bf16.msra.mxu0 %v1822
        %1840 = vmatprep.subr.bf16.mxu0 0
        %1841 = vmatpush2.bf16.msra.mxu0 0
        %1842 = vmatprep.subr.bf16.mxu0 0
        %1843 = vmatpush2.bf16.msra.mxu0 0
        %1844 = vmatprep.subr.bf16.mxu0 0
        %1845 = vmatpush2.bf16.msra.mxu0 0
        %1846 = vmatprep.subr.bf16.mxu0 0
        %1847 = vmatpush2.bf16.msra.mxu0 0
        %1848 = vmatprep.subr.bf16.mxu0 0
        %1849 = vmatpush2.bf16.msra.mxu0 0
        %1850 = vmatprep.subr.bf16.mxu0 0
        %1851 = vmatpush2.bf16.msra.mxu0 0
        %1852 = vmatprep.subr.bf16.mxu0 0
        %1853 = vmatpush2.bf16.msra.mxu0 0
        %1854 = vmatprep.subr.bf16.mxu0 0
        %1855 = vmatpush2.bf16.msra.mxu0 0
        %1856 = vmatprep.mubr.bf16.mxu0 0
        %1857 = vmatmul.mubr.bf16.gmra.mxu0 %v1819
        %v1858 = vpop.f32.mrf.mxu0
        %v1859 = vadd.f32 0.0, %v1858
        %v1860 = vpop.f32.mrf.mxu0
        %v1861 = vpop.f32.mrf.mxu0
        %v1862 = vadd.f32 0.0, %v1861
        %v1863 = vpop.f32.mrf.mxu0
        %1864 = vdwg.mxu0
        %v1865 = vadd.f32 %v1591, %v1859
        %v1866 = vadd.f32 %v1592, %v1862
        %1867 = vrot.lane.b32.xlu0 %v1044, 104
        %v1868 = vpop.permute.xlu0 %1867
        %1869 = vrot.lane.b32.xlu0 %v1046, 104
        %v1870 = vpop.permute.xlu0 %1869
        %v1872 = vsel %vm1050, %v1868, 0
        %v1875 = vsel %vm1050, %v1870, 0
        %1877 = vmatprep.subr.bf16.mxu0 0
        %1878 = vmatpush1.bf16.xpose.msra.mxu0 0
        %1879 = vmatprep.subr.bf16.mxu0 0
        %1880 = vmatpush1.bf16.xpose.msra.mxu0 0
        %1881 = vmatprep.subr.bf16.mxu0 0
        %1882 = vmatpush1.bf16.xpose.msra.mxu0 0
        %1883 = vmatprep.subr.bf16.mxu0 0
        %1884 = vmatpush1.bf16.xpose.msra.mxu0 0
        %1885 = vmatprep.subr.bf16.mxu0 0
        %1886 = vmatpush1.bf16.xpose.msra.mxu0 0
        %1887 = vmatprep.subr.bf16.mxu0 0
        %1888 = vmatpush1.bf16.xpose.msra.mxu0 0
        %1889 = vmatprep.subr.bf16.mxu0 0
        %1890 = vmatpush1.bf16.xpose.msra.mxu0 0
        %1891 = vmatprep.subr.bf16.mxu0 0
        %1892 = vmatpush1.bf16.xpose.msra.mxu0 %v1875
        %1893 = vmatprep.subr.bf16.mxu0 0
        %1894 = vmatpush2.bf16.xpose.msra.mxu0 0
        %1895 = vmatprep.subr.bf16.mxu0 0
        %1896 = vmatpush2.bf16.xpose.msra.mxu0 0
        %1897 = vmatprep.subr.bf16.mxu0 0
        %1898 = vmatpush2.bf16.xpose.msra.mxu0 0
        %1899 = vmatprep.subr.bf16.mxu0 0
        %1900 = vmatpush2.bf16.xpose.msra.mxu0 0
        %1901 = vmatprep.subr.bf16.mxu0 0
        %1902 = vmatpush2.bf16.xpose.msra.mxu0 0
        %1903 = vmatprep.subr.bf16.mxu0 0
        %1904 = vmatpush2.bf16.xpose.msra.mxu0 0
        %1905 = vmatprep.subr.bf16.mxu0 0
        %1906 = vmatpush2.bf16.xpose.msra.mxu0 0
        %1907 = vmatprep.subr.bf16.mxu0 0
        %1908 = vmatpush2.bf16.xpose.msra.mxu0 0
        %1909 = vmatprep.mubr.bf16.mxu0 0
        %1910 = vmatmul.mubr.bf16.gmra.mxu0 %v1872
        %v1911 = vpop.f32.mrf.mxu0
        %v1912 = vadd.f32 0.0, %v1911
        %v1913 = vpop.f32.mrf.mxu0
        %v1914 = vpop.f32.mrf.mxu0
        %v1915 = vpop.f32.mrf.mxu0
        %1916 = vdwg.mxu0
        %1917 = vrot.lane.b32.xlu0 %v1045, 104
        %v1918 = vpop.permute.xlu0 %1917
        %1919 = vrot.lane.b32.xlu0 %v1047, 104
        %v1920 = vpop.permute.xlu0 %1919
        %v1922 = vsel %vm1050, %v1918, 0
        %v1925 = vsel %vm1050, %v1920, 0
        %1927 = vmatprep.subr.bf16.mxu0 0
        %1928 = vmatpush1.bf16.xpose.msra.mxu0 0
        %1929 = vmatprep.subr.bf16.mxu0 0
        %1930 = vmatpush1.bf16.xpose.msra.mxu0 0
        %1931 = vmatprep.subr.bf16.mxu0 0
        %1932 = vmatpush1.bf16.xpose.msra.mxu0 0
        %1933 = vmatprep.subr.bf16.mxu0 0
        %1934 = vmatpush1.bf16.xpose.msra.mxu0 0
        %1935 = vmatprep.subr.bf16.mxu0 0
        %1936 = vmatpush1.bf16.xpose.msra.mxu0 0
        %1937 = vmatprep.subr.bf16.mxu0 0
        %1938 = vmatpush1.bf16.xpose.msra.mxu0 0
        %1939 = vmatprep.subr.bf16.mxu0 0
        %1940 = vmatpush1.bf16.xpose.msra.mxu0 0
        %1941 = vmatprep.subr.bf16.mxu0 0
        %1942 = vmatpush1.bf16.xpose.msra.mxu0 %v1925
        %1943 = vmatprep.subr.bf16.mxu0 0
        %1944 = vmatpush2.bf16.xpose.msra.mxu0 0
        %1945 = vmatprep.subr.bf16.mxu0 0
        %1946 = vmatpush2.bf16.xpose.msra.mxu0 0
        %1947 = vmatprep.subr.bf16.mxu0 0
        %1948 = vmatpush2.bf16.xpose.msra.mxu0 0
        %1949 = vmatprep.subr.bf16.mxu0 0
        %1950 = vmatpush2.bf16.xpose.msra.mxu0 0
        %1951 = vmatprep.subr.bf16.mxu0 0
        %1952 = vmatpush2.bf16.xpose.msra.mxu0 0
        %1953 = vmatprep.subr.bf16.mxu0 0
        %1954 = vmatpush2.bf16.xpose.msra.mxu0 0
        %1955 = vmatprep.subr.bf16.mxu0 0
        %1956 = vmatpush2.bf16.xpose.msra.mxu0 0
        %1957 = vmatprep.subr.bf16.mxu0 0
        %1958 = vmatpush2.bf16.xpose.msra.mxu0 0
        %1959 = vmatprep.mubr.bf16.mxu0 0
        %1960 = vmatmul.mubr.bf16.gmra.mxu0 %v1922
        %v1961 = vpop.f32.mrf.mxu0
        %v1962 = vadd.f32 0.0, %v1961
        %v1963 = vpop.f32.mrf.mxu0
        %v1964 = vpop.f32.mrf.mxu0
        %v1965 = vpop.f32.mrf.mxu0
        %1966 = vdwg.mxu0
        %v1967 = vmul.f32 %v1912, 0.35355338
        %v1968 = vmul.f32 %v1962, 0.35355338
        %v1969 = vsel %vm1050, %v1967, -inf
        %1970 = vmax.xlane.f32.xlu0 %v1969
        %v1971 = vpop.xlane.xlu0 %1970
        %v1972 = vsel %vm1050, %v1968, -inf
        %1973 = vmax.xlane.f32.xlu0 %v1972
        %v1974 = vpop.xlane.xlu0 %1973
        %v1975 = vsub.f32 %v1967, %v1971
        %v1976 = vsub.f32 %v1968, %v1974
        %v1977 = vmul.f32 %v1975, 1.442695
        %v1978 = vpow.pop %v1977
        %v1979 = vmul.f32 %v1976, 1.442695
        %v1980 = vpow.pop %v1979
        %v1981 = vsel %vm1050, %v1978, 0.0
        %1982 = vadd.xlane.f32.xlu0 %v1981
        %v1983 = vpop.xlane.xlu0 %1982
        %v1984 = vsel %vm1050, %v1980, 0.0
        %1985 = vadd.xlane.f32.xlu0 %v1984
        %v1986 = vpop.xlane.xlu0 %1985
        %v1987 = vrcp.pop %v1983
        %v1988 = vrcp.pop %v1986
        %v1989 = vmul.f32 %v1978, %v1987
        %v1990 = vmul.f32 %v1980, %v1988
        %v1991 = vpack.c.bf16 %v1989, %v1989
        %v1992 = vpack.c.bf16 %v1990, %v1990
        %1993 = vrot.lane.b32.xlu0 %v1048, 104
        %v1994 = vpop.permute.xlu0 %1993
        %v1996 = vsel %vm1050, %v1991, 0
        %v1999 = vsel %vm1172, %v1994, 0
        %2001 = vmatprep.subr.bf16.mxu0 0
        %2002 = vmatpush1.bf16.msra.mxu0 0
        %2003 = vmatprep.subr.bf16.mxu0 0
        %2004 = vmatpush1.bf16.msra.mxu0 0
        %2005 = vmatprep.subr.bf16.mxu0 0
        %2006 = vmatpush1.bf16.msra.mxu0 0
        %2007 = vmatprep.subr.bf16.mxu0 0
        %2008 = vmatpush1.bf16.msra.mxu0 0
        %2009 = vmatprep.subr.bf16.mxu0 0
        %2010 = vmatpush1.bf16.msra.mxu0 0
        %2011 = vmatprep.subr.bf16.mxu0 0
        %2012 = vmatpush1.bf16.msra.mxu0 0
        %2013 = vmatprep.subr.bf16.mxu0 0
        %2014 = vmatpush1.bf16.msra.mxu0 0
        %2015 = vmatprep.subr.bf16.mxu0 0
        %2016 = vmatpush1.bf16.msra.mxu0 %v1999
        %2017 = vmatprep.subr.bf16.mxu0 0
        %2018 = vmatpush2.bf16.msra.mxu0 0
        %2019 = vmatprep.subr.bf16.mxu0 0
        %2020 = vmatpush2.bf16.msra.mxu0 0
        %2021 = vmatprep.subr.bf16.mxu0 0
        %2022 = vmatpush2.bf16.msra.mxu0 0
        %2023 = vmatprep.subr.bf16.mxu0 0
        %2024 = vmatpush2.bf16.msra.mxu0 0
        %2025 = vmatprep.subr.bf16.mxu0 0
        %2026 = vmatpush2.bf16.msra.mxu0 0
        %2027 = vmatprep.subr.bf16.mxu0 0
        %2028 = vmatpush2.bf16.msra.mxu0 0
        %2029 = vmatprep.subr.bf16.mxu0 0
        %2030 = vmatpush2.bf16.msra.mxu0 0
        %2031 = vmatprep.subr.bf16.mxu0 0
        %2032 = vmatpush2.bf16.msra.mxu0 0
        %2033 = vmatprep.mubr.bf16.mxu0 0
        %2034 = vmatmul.mubr.bf16.gmra.mxu0 %v1996
        %v2035 = vpop.f32.mrf.mxu0
        %v2036 = vadd.f32 0.0, %v2035
        %v2037 = vpop.f32.mrf.mxu0
        %v2038 = vpop.f32.mrf.mxu0
        %v2039 = vpop.f32.mrf.mxu0
        %2040 = vdwg.mxu0
        %2041 = vrot.lane.b32.xlu0 %v1049, 104
        %v2042 = vpop.permute.xlu0 %2041
        %v2044 = vsel %vm1050, %v1992, 0
        %v2047 = vsel %vm1172, %v2042, 0
        %2049 = vmatprep.subr.bf16.mxu0 0
        %2050 = vmatpush1.bf16.msra.mxu0 0
        %2051 = vmatprep.subr.bf16.mxu0 0
        %2052 = vmatpush1.bf16.msra.mxu0 0
        %2053 = vmatprep.subr.bf16.mxu0 0
        %2054 = vmatpush1.bf16.msra.mxu0 0
        %2055 = vmatprep.subr.bf16.mxu0 0
        %2056 = vmatpush1.bf16.msra.mxu0 0
        %2057 = vmatprep.subr.bf16.mxu0 0
        %2058 = vmatpush1.bf16.msra.mxu0 0
        %2059 = vmatprep.subr.bf16.mxu0 0
        %2060 = vmatpush1.bf16.msra.mxu0 0
        %2061 = vmatprep.subr.bf16.mxu0 0
        %2062 = vmatpush1.bf16.msra.mxu0 0
        %2063 = vmatprep.subr.bf16.mxu0 0
        %2064 = vmatpush1.bf16.msra.mxu0 %v2047
        %2065 = vmatprep.subr.bf16.mxu0 0
        %2066 = vmatpush2.bf16.msra.mxu0 0
        %2067 = vmatprep.subr.bf16.mxu0 0
        %2068 = vmatpush2.bf16.msra.mxu0 0
        %2069 = vmatprep.subr.bf16.mxu0 0
        %2070 = vmatpush2.bf16.msra.mxu0 0
        %2071 = vmatprep.subr.bf16.mxu0 0
        %2072 = vmatpush2.bf16.msra.mxu0 0
        %2073 = vmatprep.subr.bf16.mxu0 0
        %2074 = vmatpush2.bf16.msra.mxu0 0
        %2075 = vmatprep.subr.bf16.mxu0 0
        %2076 = vmatpush2.bf16.msra.mxu0 0
        %2077 = vmatprep.subr.bf16.mxu0 0
        %2078 = vmatpush2.bf16.msra.mxu0 0
        %2079 = vmatprep.subr.bf16.mxu0 0
        %2080 = vmatpush2.bf16.msra.mxu0 0
        %2081 = vmatprep.mubr.bf16.mxu0 0
        %2082 = vmatmul.mubr.bf16.gmra.mxu0 %v2044
        %v2083 = vpop.f32.mrf.mxu0
        %v2084 = vadd.f32 0.0, %v2083
        %v2085 = vpop.f32.mrf.mxu0
        %v2086 = vpop.f32.mrf.mxu0
        %v2087 = vpop.f32.mrf.mxu0
        %2088 = vdwg.mxu0
        %v2089 = vpack.c.bf16 %v2084, %v2036
        %s2090 = scalar_lea.vmem %s667, 12 [#allocation6]
        %v2091 = vld [vmem:[%s2090] sm:$0xf]
        %v2093 = vsel %vm1050, %v2089, 0
        %v2096 = vsel %vm1172, %v2091, 0
        %2098 = vmatprep.subr.bf16.mxu0 0
        %2099 = vmatpush1.bf16.msra.mxu0 0
        %2100 = vmatprep.subr.bf16.mxu0 0
        %2101 = vmatpush1.bf16.msra.mxu0 0
        %2102 = vmatprep.subr.bf16.mxu0 0
        %2103 = vmatpush1.bf16.msra.mxu0 0
        %2104 = vmatprep.subr.bf16.mxu0 0
        %2105 = vmatpush1.bf16.msra.mxu0 0
        %2106 = vmatprep.subr.bf16.mxu0 0
        %2107 = vmatpush1.bf16.msra.mxu0 0
        %2108 = vmatprep.subr.bf16.mxu0 0
        %2109 = vmatpush1.bf16.msra.mxu0 0
        %2110 = vmatprep.subr.bf16.mxu0 0
        %2111 = vmatpush1.bf16.msra.mxu0 0
        %2112 = vmatprep.subr.bf16.mxu0 0
        %2113 = vmatpush1.bf16.msra.mxu0 %v2096
        %2114 = vmatprep.subr.bf16.mxu0 0
        %2115 = vmatpush2.bf16.msra.mxu0 0
        %2116 = vmatprep.subr.bf16.mxu0 0
        %2117 = vmatpush2.bf16.msra.mxu0 0
        %2118 = vmatprep.subr.bf16.mxu0 0
        %2119 = vmatpush2.bf16.msra.mxu0 0
        %2120 = vmatprep.subr.bf16.mxu0 0
        %2121 = vmatpush2.bf16.msra.mxu0 0
        %2122 = vmatprep.subr.bf16.mxu0 0
        %2123 = vmatpush2.bf16.msra.mxu0 0
        %2124 = vmatprep.subr.bf16.mxu0 0
        %2125 = vmatpush2.bf16.msra.mxu0 0
        %2126 = vmatprep.subr.bf16.mxu0 0
        %2127 = vmatpush2.bf16.msra.mxu0 0
        %2128 = vmatprep.subr.bf16.mxu0 0
        %2129 = vmatpush2.bf16.msra.mxu0 0
        %2130 = vmatprep.mubr.bf16.mxu0 0
        %2131 = vmatmul.mubr.bf16.gmra.mxu0 %v2093
        %v2132 = vpop.f32.mrf.mxu0
        %v2133 = vadd.f32 0.0, %v2132
        %v2134 = vpop.f32.mrf.mxu0
        %v2135 = vpop.f32.mrf.mxu0
        %v2136 = vadd.f32 0.0, %v2135
        %v2137 = vpop.f32.mrf.mxu0
        %2138 = vdwg.mxu0
        %v2139 = vadd.f32 %v1865, %v2133
        %v2140 = vadd.f32 %v1866, %v2136
        %v2141 = vadd.f32 %v837, %v2139
        %v2142 = vadd.f32 %v838, %v2140
        %v2143 = vld [vmem:[%s817] sm:$0x1]
        %v2144 = vld [vmem:[%s820] sm:$0x1]
        %v2145 = vsel %vm863, %v2141, 0.0
        %2146 = vadd.xlane.f32.xlu0 %v2145
        %v2147 = vpop.xlane.xlu0 %2146
        %v2148 = vsel %vm863, %v2142, 0.0
        %2149 = vadd.xlane.f32.xlu0 %v2148
        %v2150 = vpop.xlane.xlu0 %2149
        %v2151 = vrcp.pop 32.0
        %v2152 = vmul.f32 %v2147, %v2151
        %v2153 = vmul.f32 %v2150, %v2151
        %v2154 = vmul.f32 %v2141, %v2141
        %v2155 = vmul.f32 %v2142, %v2142
        %v2156 = vsel %vm863, %v2154, 0.0
        %2157 = vadd.xlane.f32.xlu0 %v2156
        %v2158 = vpop.xlane.xlu0 %2157
        %v2159 = vsel %vm863, %v2155, 0.0
        %2160 = vadd.xlane.f32.xlu0 %v2159
        %v2161 = vpop.xlane.xlu0 %2160
        %v2162 = vmul.f32 %v2158, %v2151
        %v2163 = vmul.f32 %v2161, %v2151
        %v2164 = vmul.f32 %v2152, %v2152
        %v2165 = vmul.f32 %v2153, %v2153
        %v2166 = vsub.f32 %v2162, %v2164
        %v2167 = vsub.f32 %v2163, %v2165
        %v2168 = vsub.f32 %v2141, %v2152
        %v2169 = vsub.f32 %v2142, %v2153
        %v2170 = vadd.f32 %v2166, 1e-05
        %v2171 = vadd.f32 %v2167, 1e-05
        %v2172 = vrsqrt.pop %v2170
        %v2173 = vrsqrt.pop %v2171
        %v2174 = vmul.f32 %v2168, %v2172
        %v2175 = vmul.f32 %v2169, %v2173
        %v2177 = vlaneseq
        %v2178 = vshrl.u32 %v2177, 7
        %v2179 = vsub.s32 0, %v2178
        %v2180 = vrot.slane %v2143, %v2179
        %v2182 = vmul.f32 %v2174, %v2180
        %v2183 = vmul.f32 %v2175, %v2180
        %v2185 = vlaneseq
        %v2186 = vshrl.u32 %v2185, 7
        %v2187 = vsub.s32 0, %v2186
        %v2188 = vrot.slane %v2144, %v2187
        %v2190 = vadd.f32 %v2182, %v2188
        %v2191 = vadd.f32 %v2183, %v2188
        %v2192 = vpack.c.bf16 %v2191, %v2190
        %v2193 = vld [vmem:[%s676] sm:$0xf]
        %v2194 = vld [vmem:[%s676 + $0x4] sm:$0xf]
        %v2195 = vld [vmem:[%s676 + $0x8] sm:$0xf]
        %v2196 = vld [vmem:[%s676 + $0xc] sm:$0xf]
        %v2197 = vld [vmem:[%s811] sm:$0x1]
        %v2199 = vlaneseq
        %v2200 = vshrl.u32 %v2199, 7
        %v2201 = vsub.s32 0, %v2200
        %v2202 = vrot.slane %v2197, %v2201
        %v2208 = vunpack.c.l.b16 %v2193
        %v2209 = vunpack.c.l.b16 %v2194
        %v2210 = vunpack.c.l.b16 %v2195
        %v2211 = vunpack.c.l.b16 %v2196
        %v2212 = vpack.c.b16 %v2209, %v2208
        %v2213 = vpack.c.b16 %v2211, %v2210
        %v2217 = vsel %vm863, %v2192, 0
        %2219 = vmatprep.subr.bf16.mxu0 0
        %2220 = vmatpush1.bf16.msra.mxu0 0
        %2221 = vmatprep.subr.bf16.mxu0 0
        %2222 = vmatpush1.bf16.msra.mxu0 0
        %2223 = vmatprep.subr.bf16.mxu0 0
        %2224 = vmatpush1.bf16.msra.mxu0 0
        %2225 = vmatprep.subr.bf16.mxu0 0
        %2226 = vmatpush1.bf16.msra.mxu0 0
        %2227 = vmatprep.subr.bf16.mxu0 0
        %2228 = vmatpush1.bf16.msra.mxu0 0
        %2229 = vmatprep.subr.bf16.mxu0 0
        %2230 = vmatpush1.bf16.msra.mxu0 0
        %2231 = vmatprep.subr.bf16.mxu0 0
        %2232 = vmatpush1.bf16.msra.mxu0 %v2213
        %2233 = vmatprep.subr.bf16.mxu0 0
        %2234 = vmatpush1.bf16.msra.mxu0 %v2212
        %2235 = vmatprep.subr.bf16.mxu0 0
        %2236 = vmatpush2.bf16.msra.mxu0 0
        %2237 = vmatprep.subr.bf16.mxu0 0
        %2238 = vmatpush2.bf16.msra.mxu0 0
        %2239 = vmatprep.subr.bf16.mxu0 0
        %2240 = vmatpush2.bf16.msra.mxu0 0
        %2241 = vmatprep.subr.bf16.mxu0 0
        %2242 = vmatpush2.bf16.msra.mxu0 0
        %2243 = vmatprep.subr.bf16.mxu0 0
        %2244 = vmatpush2.bf16.msra.mxu0 0
        %2245 = vmatprep.subr.bf16.mxu0 0
        %2246 = vmatpush2.bf16.msra.mxu0 0
        %2247 = vmatprep.subr.bf16.mxu0 0
        %2248 = vmatpush2.bf16.msra.mxu0 0
        %2249 = vmatprep.subr.bf16.mxu0 0
        %2250 = vmatpush2.bf16.msra.mxu0 0
        %2251 = vmatprep.mubr.bf16.mxu0 0
        %2252 = vmatmul.mubr.bf16.gmra.mxu0 %v2217
        %v2253 = vpop.f32.mrf.mxu0
        %v2254 = vadd.f32 %v2202, %v2253
        %v2255 = vpop.f32.mrf.mxu0
        %v2256 = vpop.f32.mrf.mxu0
        %v2257 = vadd.f32 %v2202, %v2256
        %v2258 = vpop.f32.mrf.mxu0
        %2259 = vdwg.mxu0
        %v2260 = vmax.f32 %v2254, 0.0
        %v2261 = vmax.f32 %v2257, 0.0
        %v2262 = vpack.c.bf16 %v2261, %v2260
        %v2263 = vld [vmem:[%s796] sm:$0xf]
        %v2264 = vld [vmem:[%s796 + $0x4] sm:$0xf]
        %v2265 = vld [vmem:[%s796 + $0x8] sm:$0xf]
        %v2266 = vld [vmem:[%s796 + $0xc] sm:$0xf]
        %v2267 = vld [vmem:[%s796 + $0x10] sm:$0xf]
        %v2268 = vld [vmem:[%s796 + $0x14] sm:$0xf]
        %v2269 = vld [vmem:[%s796 + $0x18] sm:$0xf]
        %v2270 = vld [vmem:[%s796 + $0x1c] sm:$0xf]
        %v2271 = vld [vmem:[%s814] sm:$0x1]
        %v2273 = vlaneseq
        %v2274 = vshrl.u32 %v2273, 7
        %v2275 = vsub.s32 0, %v2274
        %v2276 = vrot.slane %v2271, %v2275
        %v2286 = vunpack.c.l.b16 %v2263
        %v2287 = vunpack.c.l.b16 %v2264
        %v2288 = vunpack.c.l.b16 %v2265
        %v2289 = vunpack.c.l.b16 %v2266
        %v2290 = vunpack.c.l.b16 %v2267
        %v2291 = vunpack.c.l.b16 %v2268
        %v2292 = vunpack.c.l.b16 %v2269
        %v2293 = vunpack.c.l.b16 %v2270
        %v2294 = vpack.c.b16 %v2287, %v2286
        %v2295 = vpack.c.b16 %v2289, %v2288
        %v2296 = vpack.c.b16 %v2291, %v2290
        %v2297 = vpack.c.b16 %v2293, %v2292
        %vm2302 = vcmask 523264
        %v2304 = vsel %vm2302, %v2262, 0
        %2306 = vmatprep.subr.bf16.mxu0 0
        %2307 = vmatpush1.bf16.msra.mxu0 0
        %2308 = vmatprep.subr.bf16.mxu0 0
        %2309 = vmatpush1.bf16.msra.mxu0 0
        %2310 = vmatprep.subr.bf16.mxu0 0
        %2311 = vmatpush1.bf16.msra.mxu0 0
        %2312 = vmatprep.subr.bf16.mxu0 0
        %2313 = vmatpush1.bf16.msra.mxu0 0
        %2314 = vmatprep.subr.bf16.mxu0 0
        %2315 = vmatpush1.bf16.msra.mxu0 %v2297
        %2316 = vmatprep.subr.bf16.mxu0 0
        %2317 = vmatpush1.bf16.msra.mxu0 %v2296
        %2318 = vmatprep.subr.bf16.mxu0 0
        %2319 = vmatpush1.bf16.msra.mxu0 %v2295
        %2320 = vmatprep.subr.bf16.mxu0 0
        %2321 = vmatpush1.bf16.msra.mxu0 %v2294
        %2322 = vmatprep.subr.bf16.mxu0 0
        %2323 = vmatpush2.bf16.msra.mxu0 0
        %2324 = vmatprep.subr.bf16.mxu0 0
        %2325 = vmatpush2.bf16.msra.mxu0 0
        %2326 = vmatprep.subr.bf16.mxu0 0
        %2327 = vmatpush2.bf16.msra.mxu0 0
        %2328 = vmatprep.subr.bf16.mxu0 0
        %2329 = vmatpush2.bf16.msra.mxu0 0
        %2330 = vmatprep.subr.bf16.mxu0 0
        %2331 = vmatpush2.bf16.msra.mxu0 0
        %2332 = vmatprep.subr.bf16.mxu0 0
        %2333 = vmatpush2.bf16.msra.mxu0 0
        %2334 = vmatprep.subr.bf16.mxu0 0
        %2335 = vmatpush2.bf16.msra.mxu0 0
        %2336 = vmatprep.subr.bf16.mxu0 0
        %2337 = vmatpush2.bf16.msra.mxu0 0
        %2338 = vmatprep.mubr.bf16.mxu0 0
        %2339 = vmatmul.mubr.bf16.gmra.mxu0 %v2304
        %v2340 = vpop.f32.mrf.mxu0
        %v2341 = vadd.f32 %v2276, %v2340
        %v2342 = vpop.f32.mrf.mxu0
        %v2343 = vpop.f32.mrf.mxu0
        %v2344 = vadd.f32 %v2276, %v2343
        %v2345 = vpop.f32.mrf.mxu0
        %2346 = vdwg.mxu0
        %v2347 = vadd.f32 %v2190, %v2341
        %v2348 = vadd.f32 %v2191, %v2344
        %v2349 = vld [vmem:[%s823] sm:$0x1]
        %v2350 = vld [vmem:[%s826] sm:$0x1]
        %v2351 = vsel %vm863, %v2347, 0.0
        %2352 = vadd.xlane.f32.xlu0 %v2351
        %v2353 = vpop.xlane.xlu0 %2352
        %v2354 = vsel %vm863, %v2348, 0.0
        %2355 = vadd.xlane.f32.xlu0 %v2354
        %v2356 = vpop.xlane.xlu0 %2355
        %v2357 = vmul.f32 %v2353, %v2151
        %v2358 = vmul.f32 %v2356, %v2151
        %v2359 = vmul.f32 %v2347, %v2347
        %v2360 = vmul.f32 %v2348, %v2348
        %v2361 = vsel %vm863, %v2359, 0.0
        %2362 = vadd.xlane.f32.xlu0 %v2361
        %v2363 = vpop.xlane.xlu0 %2362
        %v2364 = vsel %vm863, %v2360, 0.0
        %2365 = vadd.xlane.f32.xlu0 %v2364
        %v2366 = vpop.xlane.xlu0 %2365
        %v2367 = vmul.f32 %v2363, %v2151
        %v2368 = vmul.f32 %v2366, %v2151
        %v2369 = vmul.f32 %v2357, %v2357
        %v2370 = vmul.f32 %v2358, %v2358
        %v2371 = vsub.f32 %v2367, %v2369
        %v2372 = vsub.f32 %v2368, %v2370
        %v2373 = vsub.f32 %v2347, %v2357
        %v2374 = vsub.f32 %v2348, %v2358
        %v2375 = vadd.f32 %v2371, 1e-05
        %v2376 = vadd.f32 %v2372, 1e-05
        %v2377 = vrsqrt.pop %v2375
        %v2378 = vrsqrt.pop %v2376
        %v2379 = vmul.f32 %v2373, %v2377
        %v2380 = vmul.f32 %v2374, %v2378
        %v2382 = vlaneseq
        %v2383 = vshrl.u32 %v2382, 7
        %v2384 = vsub.s32 0, %v2383
        %v2385 = vrot.slane %v2349, %v2384
        %v2387 = vmul.f32 %v2379, %v2385
        %v2388 = vmul.f32 %v2380, %v2385
        %v2390 = vlaneseq
        %v2391 = vshrl.u32 %v2390, 7
        %v2392 = vsub.s32 0, %v2391
        %v2393 = vrot.slane %v2350, %v2392
        %v2395 = vadd.f32 %v2387, %v2393
        %v2396 = vadd.f32 %v2388, %v2393
        %2397 = vst.msk [vmem:[#allocation2] sm:$0xff] %vm863, %v2395
        %2398 = vst.msk [vmem:[#allocation2 + $0x8] sm:$0xff] %vm863, %v2396
        %p2399 = scmp.eq.s32.totalorder %s33, 1
        // Predicated region
        $region105: #{tpu_custom_call.1} parent=87 // pred_check
          %p2400 = pneg %p2399
        $region106: #{tpu_custom_call.1} parent=87 // pred_check_branch
          %2402 = sbr.rel (%p2400) target = $region108
        $region107: #{tpu_custom_call.1} parent=87 // pred_region
          %2403 = vst.msk [vmem:[#allocation9] sm:$0xff] %vm863, %v2395
          %2404 = vst.msk [vmem:[#allocation9 + $0x8] sm:$0xff] %vm863, %v2396
        $region108: #{tpu_custom_call.1} parent=87 // pred_fallthru
          _
        // Predicated region
        $region109: #{tpu_custom_call.1} parent=87 // pred_check
          %p2405 = pneg %p483
        $region110: #{tpu_custom_call.1} parent=87 // pred_check_branch
          %2407 = sbr.rel (%p2405) target = $region112
        $region111: #{tpu_custom_call.1} parent=87 // pred_region
          %s2409 = ssub.s32 256, 256
          %2410 = vsyncadd [#allocation5], %s2409
          %s2411 = sshll.u32 [#allocation9], 4
          %s2412 = int_to_ptr.vmem [resolvable:$true] %s2411
          %2417 = dma.vmem_to_hbm [thread:$0]  %s2412, 256, %s17, [#allocation5], 128, 128, 8
        $region112: #{tpu_custom_call.1} parent=87 // pred_fallthru
          _
        // Predicated region
        $region113: #{tpu_custom_call.1} parent=87 // pred_check
          %p2418 = pneg %p483
        $region114: #{tpu_custom_call.1} parent=87 // pred_check_branch
          %2420 = sbr.rel (%p2418) target = $region116
        $region115: #{tpu_custom_call.1} parent=87 // pred_region
          %2421 = dma.done [#allocation5], 256
        $region116: #{tpu_custom_call.1} parent=87 // pred_fallthru
          _
      $region88: #{tpu_custom_call.1} parent=5 // pred_fallthru
        _
      %p2422 = scmp.le.s32.totalorder 2, %s28
      // Predicated region
      $region117: #{tpu_custom_call.1} parent=5 // pred_check
        %p2423 = pneg %p2422
      $region118: #{tpu_custom_call.1} parent=5 // pred_check_branch
        %2425 = sbr.rel (%p2423) target = $region120
      $region119: #{tpu_custom_call.1} parent=5 // pred_region
        %s2426 = ssub.s32 %s28, 2
      $region120: #{tpu_custom_call.1} parent=5 // pred_fallthru
        _
    $region6: #{tpu_custom_call.1} parent=1 // loop_footer
      %s32 = sadd.s32 1, %s28
    $region7: #{tpu_custom_call.1} parent=1 // loop_footer_branch
      %27 = sbr.rel target = $region3
    $region8: #{tpu_custom_call.1} parent=1 // loop_exit
      _
    %2427 = vsyncpa [#allocation4], 1
    %s2428 = scalar_lea.sflag [#allocation4], 1
    %2429 = vsyncpa %s2428, 1
    %2430 = vsyncpa [#allocation7], 1
    %s2431 = scalar_lea.sflag [#allocation7], 1
    %2432 = vsyncpa %s2431, 1
    %2433 = vsyncpa [#allocation5], 1
    %s2434 = scalar_lea.sflag [#allocation5], 1
    %2435 = vsyncpa %s2434, 1

</llo_original>
